<compile_context>
chip_gen: v5e
topology: v5e:2x2
jax: 0.10.0
libtpu: 0.0.40
codegen_flags: <defaults>
</compile_context>

<pallas_src>
import jax
import jax.numpy as jnp
from jax.experimental import pallas as pl
from jax.experimental.pallas import tpu as pltpu

A = 1000          # hidden size of fc1 (module-level `a` in the PyTorch file)
B = 1000          # hidden size of fc2 (module-level `b`)
NUM_CLASSES = 11

A_PAD = 1024      # lane-aligned padding of A
B_PAD = 1024      # lane-aligned padding of B
C_PAD = 128       # lane-aligned padding of NUM_CLASSES

K_CHUNKS = 4                  # grid over the fc1-out / fc2-in contraction axis
A_CHUNK = A_PAD // K_CHUNKS   # 256

MAX_BATCH_TILE = 128          # batch tile cap (keeps acc + activations small)


def _round_up(x, m):
    return (x + m - 1) // m * m


def multilp_kernel(x_ref, w1_ref, b1_ref, w2_ref, b2_ref, w3_ref, b3_ref,
                   o_ref, acc_ref):
    k = pl.program_id(1)

    @pl.when(k == 0)
    def _():
        # Fuse the fc2 bias into the accumulator init (broadcast (1,B) -> (bt,B)).
        acc_ref[...] = jnp.zeros_like(acc_ref) + b2_ref[...]

    # Layer 1, one 256-wide output chunk:  (batch_tile, in) @ (in, A_CHUNK)
    h1 = jnp.dot(x_ref[...], w1_ref[...], preferred_element_type=jnp.float32)
    h1 = jnp.maximum(h1 + b1_ref[...], 0.0)            # f32 bias + relu

    # Layer 2 partial product over this chunk of the contraction axis.
    acc_ref[...] += jnp.dot(h1.astype(jnp.bfloat16), w2_ref[...],
                            preferred_element_type=jnp.float32)

    @pl.when(k == pl.num_programs(1) - 1)
    def _():
        h2 = jnp.maximum(acc_ref[...], 0.0)             # bias already in acc
        logits = jnp.dot(h2.astype(jnp.bfloat16), w3_ref[...],
                         preferred_element_type=jnp.float32) + b3_ref[...]

        # Mask the padded (zero-weight) classes so they get zero probability,
        # then softmax over dim=1 (matches torch.softmax(x, dim=1)).
        col = jax.lax.broadcasted_iota(jnp.int32, logits.shape, 1)
        logits = jnp.where(col < NUM_CLASSES, logits, -jnp.inf)

        m = jnp.max(logits, axis=1, keepdims=True)
        e = jnp.exp(logits - m)
        denom = jnp.sum(e, axis=1, keepdims=True)
        o_ref[...] = e * pl.reciprocal(denom, approx=True)


def multilp_forward(x, params):
    w1, b1, w2, b2, w3, b3 = params
    batch, input_size = x.shape

    # Batch tiling: multiple of 8 (sublane), capped at MAX_BATCH_TILE.
    bt = min(MAX_BATCH_TILE, _round_up(batch, 8))
    padded_batch = _round_up(batch, bt)
    n_batch_tiles = padded_batch // bt

    x_bf16 = x.astype(jnp.bfloat16)
    if padded_batch != batch:
        x_bf16 = jnp.pad(x_bf16, ((0, padded_batch - batch), (0, 0)))

    grid_spec = pltpu.PrefetchScalarGridSpec(
        num_scalar_prefetch=0,
        grid=(n_batch_tiles, K_CHUNKS),
        in_specs=[
            pl.BlockSpec((bt, input_size), lambda i, k: (i, 0)),       # x tile (resident over k)
            pl.BlockSpec((input_size, A_CHUNK), lambda i, k: (0, k)),  # w1 chunk
            pl.BlockSpec((1, A_CHUNK), lambda i, k: (0, k)),           # b1 chunk
            pl.BlockSpec((A_CHUNK, B_PAD), lambda i, k: (k, 0)),       # w2 chunk (pipelined)
            pl.BlockSpec((1, B_PAD), lambda i, k: (0, 0)),             # b2 (resident)
            pl.BlockSpec((B_PAD, C_PAD), lambda i, k: (0, 0)),         # w3 (resident)
            pl.BlockSpec((1, C_PAD), lambda i, k: (0, 0)),             # b3 (resident)
        ],
        out_specs=pl.BlockSpec((bt, C_PAD), lambda i, k: (i, 0)),
        scratch_shapes=[pltpu.VMEM((bt, B_PAD), jnp.float32)],         # layer-2 acc
    )

    out_padded = pl.pallas_call(
        multilp_kernel,
        out_shape=jax.ShapeDtypeStruct((padded_batch, C_PAD), jnp.float32),
        grid_spec=grid_spec,
        compiler_params=pltpu.CompilerParams(
            dimension_semantics=("parallel", "arbitrary"),   # batch || , K reduction
            vmem_limit_bytes=32 * 1024 * 1024,
        ),
    )(x_bf16, w1, b1, w2, b2, w3, b3)

    # Slice the padded batch / class axes back to the real sizes.
    return out_padded[:batch, :NUM_CLASSES]


def init_params(key, input_size):
    # Deterministic init mimicking nn.Linear's uniform(-1/sqrt(fan_in), ...),
    # zero-padded to lane-aligned shapes; weights cast to bf16, biases f32.
    def linear(k, fan_in, fan_out, fan_in_pad, fan_out_pad):
        kw, kb = jax.random.split(k)
        bound = 1.0 / jnp.sqrt(jnp.float32(fan_in))
        w = jax.random.uniform(kw, (fan_in, fan_out), jnp.float32, -bound, bound)
        b = jax.random.uniform(kb, (1, fan_out), jnp.float32, -bound, bound)
        w_pad = jnp.zeros((fan_in_pad, fan_out_pad), jnp.float32)
        w_pad = w_pad.at[:fan_in, :fan_out].set(w)
        b_pad = jnp.zeros((1, fan_out_pad), jnp.float32)
        b_pad = b_pad.at[:, :fan_out].set(b)
        return w_pad.astype(jnp.bfloat16), b_pad

    k1, k2, k3 = jax.random.split(key, 3)
    w1, b1 = linear(k1, input_size, A, input_size, A_PAD)
    w2, b2 = linear(k2, A, B, A_PAD, B_PAD)
    w3, b3 = linear(k3, B, NUM_CLASSES, B_PAD, C_PAD)
    return w1, b1, w2, b2, w3, b3


def reference_forward(x, params):
    # Pure-JAX reference with the same bf16 weight/activation quantization
    # (f32 accumulation), exact division in the softmax.
    w1, b1, w2, b2, w3, b3 = params
    h1 = jnp.maximum(
        jnp.dot(x.astype(jnp.bfloat16), w1, preferred_element_type=jnp.float32) + b1, 0.0)
    h2 = jnp.maximum(
        jnp.dot(h1.astype(jnp.bfloat16), w2, preferred_element_type=jnp.float32) + b2, 0.0)
    logits = jnp.dot(h2.astype(jnp.bfloat16), w3,
                     preferred_element_type=jnp.float32) + b3
    logits = logits[:, :NUM_CLASSES]
    return jax.nn.softmax(logits, axis=1)


if __name__ == "__main__":
    key = jax.random.PRNGKey(0)
    k_x, k_p = jax.random.split(key)

    batch, input_size = 8, 32
    x = jax.random.normal(k_x, (batch, input_size), jnp.float32)
    params = init_params(k_p, input_size)

    out = multilp_forward(x, params)
    out = jax.block_until_ready(out)

    ref = reference_forward(x, params)
    assert out.shape == (batch, NUM_CLASSES)
    # Tolerances account for the approx (EUP) reciprocal and bf16 inputs.
    assert jnp.allclose(out, ref, atol=5e-3, rtol=5e-2)
    assert jnp.allclose(jnp.sum(out, axis=1), jnp.ones((batch,)), atol=1e-2)

    print("KERNEL_OK")
</pallas_src>

<mosaic_0001>
module attributes {stable_mosaic.version = 11 : i64} {
  func.func @multilp_kernel(%arg0: i32, %arg1: i32, %arg2: memref<8x32xbf16, #tpu.memory_space<vmem>>, %arg3: memref<32x256xbf16, #tpu.memory_space<vmem>>, %arg4: memref<1x256xf32, #tpu.memory_space<vmem>>, %arg5: memref<256x1024xbf16, #tpu.memory_space<vmem>>, %arg6: memref<1x1024xf32, #tpu.memory_space<vmem>>, %arg7: memref<1024x128xbf16, #tpu.memory_space<vmem>>, %arg8: memref<1x128xf32, #tpu.memory_space<vmem>>, %arg9: memref<8x128xf32, #tpu.memory_space<vmem>>, %arg10: memref<8x1024xf32, #tpu.memory_space<vmem>>) attributes {dimension_semantics = [#tpu.dimension_semantics<parallel>, #tpu.dimension_semantics<arbitrary>], iteration_bounds = array<i64: 1, 4>, scalar_prefetch = 0 : i64, scratch_operands = 1 : i64, tpu.core_type = #tpu.core_type<tc>, window_params = [{transform_indices = @transform_0, window_bounds = array<i64: 8, 32>}, {transform_indices = @transform_1, window_bounds = array<i64: 32, 256>}, {transform_indices = @transform_2, window_bounds = array<i64: 1, 256>}, {transform_indices = @transform_3, window_bounds = array<i64: 256, 1024>}, {pipeline_mode = #tpu.pipeline_mode<synchronous>, transform_indices = @transform_4, window_bounds = array<i64: 1, 1024>}, {pipeline_mode = #tpu.pipeline_mode<synchronous>, transform_indices = @transform_5, window_bounds = array<i64: 1024, 128>}, {pipeline_mode = #tpu.pipeline_mode<synchronous>, transform_indices = @transform_6, window_bounds = array<i64: 1, 128>}, {transform_indices = @transform_7, window_bounds = array<i64: 8, 128>}]} {
    %c0_i32 = arith.constant 0 : i32
    %0 = arith.cmpi eq, %arg1, %c0_i32 : i32
    %1 = arith.extui %0 : i1 to i32
    %c0_i32_0 = arith.constant 0 : i32
    %2 = arith.cmpi ne, %1, %c0_i32_0 : i32
    scf.if %2 {
      %cst_15 = arith.constant 0.000000e+00 : f32
      %20 = vector.broadcast %cst_15 : f32 to vector<8x1024xf32>
      %c0_16 = arith.constant 0 : index
      %c0_17 = arith.constant 0 : index
      %21 = vector.load %arg6[%c0_16, %c0_17] : memref<1x1024xf32, #tpu.memory_space<vmem>>, vector<1x1024xf32>
      %22 = vector.broadcast %21 : vector<1x1024xf32> to vector<8x1024xf32>
      %23 = arith.addf %20, %22 : vector<8x1024xf32>
      %c0_18 = arith.constant 0 : index
      %c0_19 = arith.constant 0 : index
      %24 = vector.load %arg10[%c0_18, %c0_19] : memref<8x1024xf32, #tpu.memory_space<vmem>>, vector<8x1024xf32>
      tpu.vector_store %arg10[%c0_18, %c0_19], %23 {strides = array<i32>} : memref<8x1024xf32, #tpu.memory_space<vmem>>, vector<8x1024xf32>,
    } else {
    }
    %c0 = arith.constant 0 : index
    %c0_1 = arith.constant 0 : index
    %3 = vector.load %arg2[%c0, %c0_1] : memref<8x32xbf16, #tpu.memory_space<vmem>>, vector<8x32xbf16>
    %c0_2 = arith.constant 0 : index
    %c0_3 = arith.constant 0 : index
    %4 = vector.load %arg3[%c0_2, %c0_3] : memref<32x256xbf16, #tpu.memory_space<vmem>>, vector<32x256xbf16>
    %cst = arith.constant dense<0.000000e+00> : vector<8x256xf32>
    %5 = tpu.matmul %3, %4, %cst {dimension_numbers = #tpu.dot_dimension_numbers<[1], [0], [0], [1], [0, 0, 1, 1], [], []>} : vector<8x32xbf16>, vector<32x256xbf16>, vector<8x256xf32> -> vector<8x256xf32>
    %c0_4 = arith.constant 0 : index
    %c0_5 = arith.constant 0 : index
    %6 = vector.load %arg4[%c0_4, %c0_5] : memref<1x256xf32, #tpu.memory_space<vmem>>, vector<1x256xf32>
    %7 = vector.broadcast %6 : vector<1x256xf32> to vector<8x256xf32>
    %8 = arith.addf %5, %7 : vector<8x256xf32>
    %cst_6 = arith.constant 0.000000e+00 : f32
    %9 = vector.broadcast %cst_6 : f32 to vector<8x256xf32>
    %10 = arith.maximumf %8, %9 : vector<8x256xf32>
    %c0_7 = arith.constant 0 : index
    %c0_8 = arith.constant 0 : index
    %11 = vector.load %arg10[%c0_7, %c0_8] : memref<8x1024xf32, #tpu.memory_space<vmem>>, vector<8x1024xf32>
    %12 = arith.truncf %10 : vector<8x256xf32> to vector<8x256xbf16>
    %c0_9 = arith.constant 0 : index
    %c0_10 = arith.constant 0 : index
    %13 = vector.load %arg5[%c0_9, %c0_10] : memref<256x1024xbf16, #tpu.memory_space<vmem>>, vector<256x1024xbf16>
    %cst_11 = arith.constant dense<0.000000e+00> : vector<8x1024xf32>
    %14 = tpu.matmul %12, %13, %cst_11 {dimension_numbers = #tpu.dot_dimension_numbers<[1], [0], [0], [1], [0, 0, 1, 1], [], []>} : vector<8x256xbf16>, vector<256x1024xbf16>, vector<8x1024xf32> -> vector<8x1024xf32>
    %15 = arith.addf %11, %14 : vector<8x1024xf32>
    %c0_12 = arith.constant 0 : index
    %c0_13 = arith.constant 0 : index
    %16 = vector.load %arg10[%c0_12, %c0_13] : memref<8x1024xf32, #tpu.memory_space<vmem>>, vector<8x1024xf32>
    tpu.vector_store %arg10[%c0_12, %c0_13], %15 {strides = array<i32>} : memref<8x1024xf32, #tpu.memory_space<vmem>>, vector<8x1024xf32>,
    %c3_i32 = arith.constant 3 : i32
    %17 = arith.cmpi eq, %arg1, %c3_i32 : i32
    %18 = arith.extui %17 : i1 to i32
    %c0_i32_14 = arith.constant 0 : i32
    %19 = arith.cmpi ne, %18, %c0_i32_14 : i32
    scf.if %19 {
      %c0_15 = arith.constant 0 : index
      %c0_16 = arith.constant 0 : index
      %20 = vector.load %arg10[%c0_15, %c0_16] : memref<8x1024xf32, #tpu.memory_space<vmem>>, vector<8x1024xf32>
      %cst_17 = arith.constant 0.000000e+00 : f32
      %21 = vector.broadcast %cst_17 : f32 to vector<8x1024xf32>
      %22 = arith.maximumf %20, %21 : vector<8x1024xf32>
      %23 = arith.truncf %22 : vector<8x1024xf32> to vector<8x1024xbf16>
      %c0_18 = arith.constant 0 : index
      %c0_19 = arith.constant 0 : index
      %24 = vector.load %arg7[%c0_18, %c0_19] : memref<1024x128xbf16, #tpu.memory_space<vmem>>, vector<1024x128xbf16>
      %cst_20 = arith.constant dense<0.000000e+00> : vector<8x128xf32>
      %25 = tpu.matmul %23, %24, %cst_20 {dimension_numbers = #tpu.dot_dimension_numbers<[1], [0], [0], [1], [0, 0, 1, 1], [], []>} : vector<8x1024xbf16>, vector<1024x128xbf16>, vector<8x128xf32> -> vector<8x128xf32>
      %c0_21 = arith.constant 0 : index
      %c0_22 = arith.constant 0 : index
      %26 = vector.load %arg8[%c0_21, %c0_22] : memref<1x128xf32, #tpu.memory_space<vmem>>, vector<1x128xf32>
      %27 = vector.broadcast %26 : vector<1x128xf32> to vector<8x128xf32>
      %28 = arith.addf %25, %27 : vector<8x128xf32>
      %29 = tpu.iota {dimensions = array<i32: 1>} : vector<8x128xi32>
      %c11_i32 = arith.constant 11 : i32
      %30 = vector.broadcast %c11_i32 : i32 to vector<8x128xi32>
      %31 = arith.cmpi slt, %29, %30 : vector<8x128xi32>
      %cst_23 = arith.constant 0xFF800000 : f32
      %32 = vector.broadcast %cst_23 : f32 to vector<8x128xf32>
      %33 = arith.select %31, %28, %32 : vector<8x128xi1>, vector<8x128xf32>
      %cst_24 = arith.constant dense<0xFF800000> : vector<8xf32>
      %34 = vector.multi_reduction <maximumf>, %33, %cst_24 [1] : vector<8x128xf32> to vector<8xf32>
      %35 = vector.shape_cast %34 : vector<8xf32> to vector<8x1xf32>
      %36 = vector.broadcast %35 : vector<8x1xf32> to vector<8x128xf32>
      %37 = arith.subf %33, %36 : vector<8x128xf32>
      %38 = math.exp %37 : vector<8x128xf32>
      %cst_25 = arith.constant dense<0.000000e+00> : vector<8xf32>
      %39 = vector.multi_reduction <add>, %38, %cst_25 [1] : vector<8x128xf32> to vector<8xf32>
      %40 = vector.shape_cast %39 : vector<8xf32> to vector<8x1xf32>
      %41 = tpu.reciprocal %40 {approx = true} : vector<8x1xf32> -> vector<8x1xf32>
      %42 = vector.broadcast %41 : vector<8x1xf32> to vector<8x128xf32>
      %43 = arith.mulf %38, %42 : vector<8x128xf32>
      %c0_26 = arith.constant 0 : index
      %c0_27 = arith.constant 0 : index
      %44 = vector.load %arg9[%c0_26, %c0_27] : memref<8x128xf32, #tpu.memory_space<vmem>>, vector<8x128xf32>
      tpu.vector_store %arg9[%c0_26, %c0_27], %43 {strides = array<i32>} : memref<8x128xf32, #tpu.memory_space<vmem>>, vector<8x128xf32>,
    } else {
    }
    return
  }
  func.func @transform_0(%arg0: i32, %arg1: i32) -> (i32, i32) {
    %c0_i32 = arith.constant 0 : i32
    %c0_i32_0 = arith.constant 0 : i32
    return %arg0, %c0_i32 : i32, i32
  }
  func.func @transform_1(%arg0: i32, %arg1: i32) -> (i32, i32) {
    %c0_i32 = arith.constant 0 : i32
    %c0_i32_0 = arith.constant 0 : i32
    return %c0_i32, %arg1 : i32, i32
  }
  func.func @transform_2(%arg0: i32, %arg1: i32) -> (i32, i32) {
    %c0_i32 = arith.constant 0 : i32
    %c0_i32_0 = arith.constant 0 : i32
    return %c0_i32, %arg1 : i32, i32
  }
  func.func @transform_3(%arg0: i32, %arg1: i32) -> (i32, i32) {
    %c0_i32 = arith.constant 0 : i32
    %c0_i32_0 = arith.constant 0 : i32
    return %arg1, %c0_i32 : i32, i32
  }
  func.func @transform_4(%arg0: i32, %arg1: i32) -> (i32, i32) {
    %c0_i32 = arith.constant 0 : i32
    %c0_i32_0 = arith.constant 0 : i32
    %c0_i32_1 = arith.constant 0 : i32
    return %c0_i32, %c0_i32_0 : i32, i32
  }
  func.func @transform_5(%arg0: i32, %arg1: i32) -> (i32, i32) {
    %c0_i32 = arith.constant 0 : i32
    %c0_i32_0 = arith.constant 0 : i32
    %c0_i32_1 = arith.constant 0 : i32
    return %c0_i32, %c0_i32_0 : i32, i32
  }
  func.func @transform_6(%arg0: i32, %arg1: i32) -> (i32, i32) {
    %c0_i32 = arith.constant 0 : i32
    %c0_i32_0 = arith.constant 0 : i32
    %c0_i32_1 = arith.constant 0 : i32
    return %c0_i32, %c0_i32_0 : i32, i32
  }
  func.func @transform_7(%arg0: i32, %arg1: i32) -> (i32, i32) {
    %c0_i32 = arith.constant 0 : i32
    %c0_i32_0 = arith.constant 0 : i32
    return %arg0, %c0_i32 : i32, i32
  }
}

</mosaic_0001>

<llo_original>
// kernel: tpu_custom_call.1
$region0: #{tpu_custom_call.1}
  #allocation0 [shape = 'u32[]', space=smem, size = 0x4, offset = 0x4, fixed_abs, tag = 'smem constant byte address 0x4 - core index']
  #allocation1 [shape = 'u32[72,128]{1,0:T(1,128)}', space=vmem, size = 0x9000, scoped, tag = 'internal scratch']
  #allocation2 [shape = 'f32[8,1024]{1,0:T(8,128)}', space=vmem, size = 0x8000, scoped, tag = 'scratch operand']
  %s0 = inlined_call_operand.hbm [shape: bf16[8,32], index: 0, kind: input, shape index: {}]
  %s1 = inlined_call_operand.hbm [shape: bf16[32,1024], index: 1, kind: input, shape index: {}]
  %s2 = inlined_call_operand.hbm [shape: f32[1,1024], index: 2, kind: input, shape index: {}]
  %s3 = inlined_call_operand.hbm [shape: bf16[1024,1024], index: 3, kind: input, shape index: {}]
  %s4 = inlined_call_operand.hbm [shape: f32[1,1024], index: 4, kind: input, shape index: {}]
  %s5 = inlined_call_operand.hbm [shape: bf16[1024,128], index: 5, kind: input, shape index: {}]
  %s6 = inlined_call_operand.hbm [shape: f32[1,128], index: 6, kind: input, shape index: {}]
  %s7 = inlined_call_operand.hbm [shape: f32[8,128], index: 7, kind: output, shape index: {}]
  %s8 = sld [smem:[#allocation0]]
  $region97: #{tpu_custom_call.1} parent=0
    _
  %s10 = ssub.s32 1, %s8
  %s11 = scalar_select 0, %s10, %s8
  $region1: #{tpu_custom_call.1} parent=0
    #allocation3 [shape = 'u8[2048]{0}', space=vmem, size = 0x800, scoped, tag = 'input window, operand 0, single buffered']
    #allocation4 [shape = 's32[2]{0}', space=sflag, size = 0x8, scoped, tag = 'scoped memory for tpu_custom_call.1']
    #allocation5 [shape = 's32[2]{0}', space=sflag, size = 0x8, scoped, tag = 'scoped memory for tpu_custom_call.1']
    #allocation6 [shape = 'u8[32768]{0}', space=vmem, size = 0x8000, scoped, tag = 'input window, operand 1']
    #allocation7 [shape = 's32[2]{0}', space=sflag, size = 0x8, scoped, tag = 'scoped memory for tpu_custom_call.1']
    #allocation8 [shape = 'u8[2048]{0}', space=vmem, size = 0x800, scoped, tag = 'input window, operand 2']
    #allocation9 [shape = 'u8[1048576]{0}', space=vmem, size = 0x100000, scoped, tag = 'input window, operand 3']
    #allocation10 [shape = 's32[2]{0}', space=sflag, size = 0x8, scoped, tag = 'scoped memory for tpu_custom_call.1']
    #allocation11 [shape = 'u8[4096]{0}', space=vmem, size = 0x1000, scoped, tag = 'input window, operand 4, single buffered']
    #allocation12 [shape = 'u8[262144]{0}', space=vmem, size = 0x40000, scoped, tag = 'input window, operand 5, single buffered']
    #allocation13 [shape = 's32[1]{0}', space=sflag, size = 0x4, scoped, tag = 'scoped memory for tpu_custom_call.1']
    #allocation14 [shape = 'u8[512]{0}', space=vmem, size = 0x400, scoped, tag = 'input window, operand 6, single buffered']
    #allocation15 [shape = 'u8[4096]{0}', space=vmem, size = 0x1000, scoped, tag = 'output window, operand 0, single buffered']
    %12 = vsyncpa [#allocation4], 0
    %13 = vsyncpa [#allocation7], 0
    %s14 = scalar_lea.sflag [#allocation7], 1
    %15 = vsyncpa %s14, 0
    %16 = vsyncpa [#allocation10], 0
    %s17 = scalar_lea.sflag [#allocation10], 1
    %18 = vsyncpa %s17, 0
    %19 = vsyncpa [#allocation13], 0
    %20 = vsyncpa [#allocation5], 0
    loop: start=0, step=1, limit=6
    $region2: #{tpu_custom_call.1} parent=1 // loop_pre_header
      _
    $region3: #{tpu_custom_call.1} parent=1 // loop_header
      %s22 = sphi 0, %s26
      %p23 = scmp.ge.s32.totalorder %s22, 6
      %s29 = sphi 0, %s41
      %s30 = sphi 0, %s37
      %s31 = sphi 0, %s29
      %s32 = sphi 0, %s30
      %s33 = sphi 0, %s31
      %s34 = sphi 0, %s32
      %s44 = sphi 0, %s46
      %s47 = sphi 0, %s44
      %s48 = sphi 0, %s47
      %s64 = sphi 0, %s48
      %s70 = sphi 0, %s72
      %s73 = sphi 0, %s70
      %s74 = sphi 0, %s73
      %s90 = sphi 0, %s74
      %s96 = sphi 0, %s98
      %s99 = sphi 0, %s96
      %s100 = sphi 0, %s99
      %s116 = sphi 0, %s100
      %s122 = sphi 0, %s124
      %s125 = sphi 0, %s122
      %s126 = sphi 0, %s125
      %s142 = sphi 0, %s126
      %s146 = sphi 0, %s146
      %s148 = sphi 0, %s146
      %s149 = sphi 0, %s148
      %s163 = sphi 0, %s149
      %s167 = sphi 0, %s167
      %s169 = sphi 0, %s167
      %s170 = sphi 0, %s169
      %s184 = sphi 0, %s170
      %s188 = sphi 0, %s188
      %s190 = sphi 0, %s188
      %s191 = sphi 0, %s190
      %s205 = sphi 0, %s191
      %s211 = sphi 0, %s213
      %s214 = sphi 0, %s211
      %s215 = sphi 0, %s214
      %s231 = sphi 0, %s215
    $region4: #{tpu_custom_call.1} parent=1 // loop_header_branch
      %25 = sbr.rel (%p23) target = $region8
    $region5: #{tpu_custom_call.1} parent=1 // loop_body
      %s27 = ssub.s32 %s22, 1
      %s28 = ssub.s32 %s22, 2
      %s35 = sadd.s32 1, %s30
      %p36 = scmp.ge.s32.totalorder %s35, 4
      %s37 = scalar_select %p36, 0, %s35
      %s38 = sadd.s32 1, %s29
      %s39 = scalar_select %p36, %s38, %s29
      %p40 = scmp.ge.s32.totalorder %s39, 1
      %s41 = scalar_select %p40, 0, %s39
      %s42 = ssub.s32 %s29, %s41
      %p43 = scmp.eq.s32.totalorder %s42, 0
      %s45 = sadd.s32 %s44, 1
      %s46 = scalar_select %p43, %s44, %s45
      %p49 = pneg %p43
      %p50 = scmp.eq.s32.totalorder %s22, 3
      %p51 = por %p49, %p50
      %p52 = scmp.ne.s32.totalorder %s44, %s47
      %p53 = scmp.eq.s32.totalorder %s22, 0
      %p54 = por %p52, %p53
      %p55 = scmp.ne.s32.totalorder %s44, %s47
      %p56 = scmp.eq.s32.totalorder %s27, 3
      %p57 = por %p55, %p56
      %p58 = scmp.ne.s32.totalorder %s47, %s48
      %p59 = scmp.eq.s32.totalorder %s27, 0
      %p60 = por %p58, %p59
      %p61 = scmp.ne.s32.totalorder %s47, %s48
      %p62 = scmp.eq.s32.totalorder %s28, 3
      %p63 = por %p61, %p62
      %p65 = scmp.ne.s32.totalorder %s48, %s64
      %p66 = scmp.eq.s32.totalorder %s28, 0
      %p67 = por %p65, %p66
      %s68 = ssub.s32 %s30, %s37
      %p69 = scmp.eq.s32.totalorder %s68, 0
      %s71 = sadd.s32 %s70, 1
      %s72 = scalar_select %p69, %s70, %s71
      %p75 = pneg %p69
      %p76 = scmp.eq.s32.totalorder %s22, 3
      %p77 = por %p75, %p76
      %p78 = scmp.ne.s32.totalorder %s70, %s73
      %p79 = scmp.eq.s32.totalorder %s22, 0
      %p80 = por %p78, %p79
      %p81 = scmp.ne.s32.totalorder %s70, %s73
      %p82 = scmp.eq.s32.totalorder %s27, 3
      %p83 = por %p81, %p82
      %p84 = scmp.ne.s32.totalorder %s73, %s74
      %p85 = scmp.eq.s32.totalorder %s27, 0
      %p86 = por %p84, %p85
      %p87 = scmp.ne.s32.totalorder %s73, %s74
      %p88 = scmp.eq.s32.totalorder %s28, 3
      %p89 = por %p87, %p88
      %p91 = scmp.ne.s32.totalorder %s74, %s90
      %p92 = scmp.eq.s32.totalorder %s28, 0
      %p93 = por %p91, %p92
      %s94 = ssub.s32 %s30, %s37
      %p95 = scmp.eq.s32.totalorder %s94, 0
      %s97 = sadd.s32 %s96, 1
      %s98 = scalar_select %p95, %s96, %s97
      %p101 = pneg %p95
      %p102 = scmp.eq.s32.totalorder %s22, 3
      %p103 = por %p101, %p102
      %p104 = scmp.ne.s32.totalorder %s96, %s99
      %p105 = scmp.eq.s32.totalorder %s22, 0
      %p106 = por %p104, %p105
      %p107 = scmp.ne.s32.totalorder %s96, %s99
      %p108 = scmp.eq.s32.totalorder %s27, 3
      %p109 = por %p107, %p108
      %p110 = scmp.ne.s32.totalorder %s99, %s100
      %p111 = scmp.eq.s32.totalorder %s27, 0
      %p112 = por %p110, %p111
      %p113 = scmp.ne.s32.totalorder %s99, %s100
      %p114 = scmp.eq.s32.totalorder %s28, 3
      %p115 = por %p113, %p114
      %p117 = scmp.ne.s32.totalorder %s100, %s116
      %p118 = scmp.eq.s32.totalorder %s28, 0
      %p119 = por %p117, %p118
      %s120 = ssub.s32 %s30, %s37
      %p121 = scmp.eq.s32.totalorder %s120, 0
      %s123 = sadd.s32 %s122, 1
      %s124 = scalar_select %p121, %s122, %s123
      %p127 = pneg %p121
      %p128 = scmp.eq.s32.totalorder %s22, 3
      %p129 = por %p127, %p128
      %p130 = scmp.ne.s32.totalorder %s122, %s125
      %p131 = scmp.eq.s32.totalorder %s22, 0
      %p132 = por %p130, %p131
      %p133 = scmp.ne.s32.totalorder %s122, %s125
      %p134 = scmp.eq.s32.totalorder %s27, 3
      %p135 = por %p133, %p134
      %p136 = scmp.ne.s32.totalorder %s125, %s126
      %p137 = scmp.eq.s32.totalorder %s27, 0
      %p138 = por %p136, %p137
      %p139 = scmp.ne.s32.totalorder %s125, %s126
      %p140 = scmp.eq.s32.totalorder %s28, 3
      %p141 = por %p139, %p140
      %p143 = scmp.ne.s32.totalorder %s126, %s142
      %p144 = scmp.eq.s32.totalorder %s28, 0
      %p145 = por %p143, %p144
      %s147 = sadd.s32 %s146, 1
      %p150 = scmp.eq.s32.totalorder %s22, 3
      %p151 = scmp.ne.s32.totalorder %s146, %s148
      %p152 = scmp.eq.s32.totalorder %s22, 0
      %p153 = por %p151, %p152
      %p154 = scmp.ne.s32.totalorder %s146, %s148
      %p155 = scmp.eq.s32.totalorder %s27, 3
      %p156 = por %p154, %p155
      %p157 = scmp.ne.s32.totalorder %s148, %s149
      %p158 = scmp.eq.s32.totalorder %s27, 0
      %p159 = por %p157, %p158
      %p160 = scmp.ne.s32.totalorder %s148, %s149
      %p161 = scmp.eq.s32.totalorder %s28, 3
      %p162 = por %p160, %p161
      %p164 = scmp.ne.s32.totalorder %s149, %s163
      %p165 = scmp.eq.s32.totalorder %s28, 0
      %p166 = por %p164, %p165
      %s168 = sadd.s32 %s167, 1
      %p171 = scmp.eq.s32.totalorder %s22, 3
      %p172 = scmp.ne.s32.totalorder %s167, %s169
      %p173 = scmp.eq.s32.totalorder %s22, 0
      %p174 = por %p172, %p173
      %p175 = scmp.ne.s32.totalorder %s167, %s169
      %p176 = scmp.eq.s32.totalorder %s27, 3
      %p177 = por %p175, %p176
      %p178 = scmp.ne.s32.totalorder %s169, %s170
      %p179 = scmp.eq.s32.totalorder %s27, 0
      %p180 = por %p178, %p179
      %p181 = scmp.ne.s32.totalorder %s169, %s170
      %p182 = scmp.eq.s32.totalorder %s28, 3
      %p183 = por %p181, %p182
      %p185 = scmp.ne.s32.totalorder %s170, %s184
      %p186 = scmp.eq.s32.totalorder %s28, 0
      %p187 = por %p185, %p186
      %s189 = sadd.s32 %s188, 1
      %p192 = scmp.eq.s32.totalorder %s22, 3
      %p193 = scmp.ne.s32.totalorder %s188, %s190
      %p194 = scmp.eq.s32.totalorder %s22, 0
      %p195 = por %p193, %p194
      %p196 = scmp.ne.s32.totalorder %s188, %s190
      %p197 = scmp.eq.s32.totalorder %s27, 3
      %p198 = por %p196, %p197
      %p199 = scmp.ne.s32.totalorder %s190, %s191
      %p200 = scmp.eq.s32.totalorder %s27, 0
      %p201 = por %p199, %p200
      %p202 = scmp.ne.s32.totalorder %s190, %s191
      %p203 = scmp.eq.s32.totalorder %s28, 3
      %p204 = por %p202, %p203
      %p206 = scmp.ne.s32.totalorder %s191, %s205
      %p207 = scmp.eq.s32.totalorder %s28, 0
      %p208 = por %p206, %p207
      %s209 = ssub.s32 %s29, %s41
      %p210 = scmp.eq.s32.totalorder %s209, 0
      %s212 = sadd.s32 %s211, 1
      %s213 = scalar_select %p210, %s211, %s212
      %p216 = pneg %p210
      %p217 = scmp.eq.s32.totalorder %s22, 3
      %p218 = por %p216, %p217
      %p219 = scmp.ne.s32.totalorder %s211, %s214
      %p220 = scmp.eq.s32.totalorder %s22, 0
      %p221 = por %p219, %p220
      %p222 = scmp.ne.s32.totalorder %s211, %s214
      %p223 = scmp.eq.s32.totalorder %s27, 3
      %p224 = por %p222, %p223
      %p225 = scmp.ne.s32.totalorder %s214, %s215
      %p226 = scmp.eq.s32.totalorder %s27, 0
      %p227 = por %p225, %p226
      %p228 = scmp.ne.s32.totalorder %s214, %s215
      %p229 = scmp.eq.s32.totalorder %s28, 3
      %p230 = por %p228, %p229
      %p232 = scmp.ne.s32.totalorder %s215, %s231
      %p233 = scmp.eq.s32.totalorder %s28, 0
      %p234 = por %p232, %p233
      %p235 = scmp.le.s32.totalorder 1, %s22
      %p236 = scmp.lt.s32.totalorder %s22, 5
      %p237 = pnand %p235, %p236
      %p238 = pneg %p237
      // Predicated region
      $region9: #{tpu_custom_call.1} parent=5 // pred_check
        _
      $region10: #{tpu_custom_call.1} parent=5 // pred_check_branch
        %240 = sbr.rel (%p237) target = $region12
      $region11: #{tpu_custom_call.1} parent=5 // pred_region
        %s241 = ssub.s32 %s22, 1
        // Predicated region
        $region13: #{tpu_custom_call.1} parent=11 // pred_check
          %p242 = pneg %p60
        $region14: #{tpu_custom_call.1} parent=11 // pred_check_branch
          %244 = sbr.rel (%p242) target = $region16
        $region15: #{tpu_custom_call.1} parent=11 // pred_region
          %246 = vsyncadd [#allocation4], 0
          %s247 = smul.addr %s31, 4
          %s248 = scalar_lea.hbm %s0, %s247
          %s250 = sshll.u32 %s248, 4
          %s251 = int_to_ptr.hbm [resolvable:$true] %s250
          %s252 = sshll.u32 [#allocation3], 4
          %s253 = int_to_ptr.vmem [resolvable:$true] %s252
          %255 = dma.hbm_to_vmem [thread:$0]  %s251, 64, %s253, [#allocation4]
        $region16: #{tpu_custom_call.1} parent=11 // pred_fallthru
          _
        // Predicated region
        $region17: #{tpu_custom_call.1} parent=11 // pred_check
          %p256 = pneg %p159
        $region18: #{tpu_custom_call.1} parent=11 // pred_check_branch
          %258 = sbr.rel (%p256) target = $region20
        $region19: #{tpu_custom_call.1} parent=11 // pred_region
          %260 = vsyncadd [#allocation10], 0
          %s262 = sshll.u32 %s4, 4
          %s263 = int_to_ptr.hbm [resolvable:$true] %s262
          %s264 = sshll.u32 [#allocation11], 4
          %s265 = int_to_ptr.vmem [resolvable:$true] %s264
          %267 = dma.hbm_to_vmem [thread:$0]  %s263, 128, %s265, [#allocation10]
        $region20: #{tpu_custom_call.1} parent=11 // pred_fallthru
          _
        // Predicated region
        $region21: #{tpu_custom_call.1} parent=11 // pred_check
          %p268 = pneg %p180
        $region22: #{tpu_custom_call.1} parent=11 // pred_check_branch
          %270 = sbr.rel (%p268) target = $region24
        $region23: #{tpu_custom_call.1} parent=11 // pred_region
          %272 = vsyncadd [#allocation13], 0
          %s273 = sshll.u32 %s5, 4
          %s274 = int_to_ptr.hbm [resolvable:$true] %s273
          %s275 = sshll.u32 [#allocation12], 4
          %s276 = int_to_ptr.vmem [resolvable:$true] %s275
          %281 = dma.hbm_to_vmem [thread:$0]  %s274, 8192, %s276, [#allocation13], 64, 64, 4
        $region24: #{tpu_custom_call.1} parent=11 // pred_fallthru
          _
        // Predicated region
        $region25: #{tpu_custom_call.1} parent=11 // pred_check
          %p282 = pneg %p201
        $region26: #{tpu_custom_call.1} parent=11 // pred_check_branch
          %284 = sbr.rel (%p282) target = $region28
        $region27: #{tpu_custom_call.1} parent=11 // pred_region
          %286 = vsyncadd [#allocation13], 0
          %s288 = sshll.u32 %s6, 4
          %s289 = int_to_ptr.hbm [resolvable:$true] %s288
          %s290 = sshll.u32 [#allocation14], 4
          %s291 = int_to_ptr.vmem [resolvable:$true] %s290
          %293 = dma.hbm_to_vmem [thread:$0]  %s289, 16, %s291, [#allocation13]
        $region28: #{tpu_custom_call.1} parent=11 // pred_fallthru
          _
      $region12: #{tpu_custom_call.1} parent=5 // pred_fallthru
        _
      %p294 = scmp.lt.s32.totalorder %s22, 4
      // Predicated region
      $region29: #{tpu_custom_call.1} parent=5 // pred_check
        %p295 = pneg %p294
      $region30: #{tpu_custom_call.1} parent=5 // pred_check_branch
        %297 = sbr.rel (%p295) target = $region32
      $region31: #{tpu_custom_call.1} parent=5 // pred_region
        // Predicated region
        $region33: #{tpu_custom_call.1} parent=31 // pred_check
          %p298 = pneg %p80
        $region34: #{tpu_custom_call.1} parent=31 // pred_check_branch
          %300 = sbr.rel (%p298) target = $region36
        $region35: #{tpu_custom_call.1} parent=31 // pred_region
          %s301 = sand.u32 %s22, 1
          %s302 = scalar_lea.sflag [#allocation7], %s301
          %s303 = sand.u32 %s70, 1
          %s304 = smul.addr %s303, 32
          %s305 = scalar_lea.vmem [#allocation6], %s304
          %s306 = smul.u32 2, %s30
          %308 = vsyncadd %s302, 0
          %s309 = smul.addr %s306, 4
          %s310 = scalar_lea.hbm %s1, %s309
          %s311 = sshll.u32 %s310, 4
          %s312 = int_to_ptr.hbm [resolvable:$true] %s311
          %s313 = sshll.u32 %s305, 4
          %s314 = int_to_ptr.vmem [resolvable:$true] %s313
          %319 = dma.hbm_to_vmem [thread:$0]  %s312, 512, %s314, %s302, 512, 128, 8
        $region36: #{tpu_custom_call.1} parent=31 // pred_fallthru
          _
        // Predicated region
        $region37: #{tpu_custom_call.1} parent=31 // pred_check
          %p320 = pneg %p106
        $region38: #{tpu_custom_call.1} parent=31 // pred_check_branch
          %322 = sbr.rel (%p320) target = $region40
        $region39: #{tpu_custom_call.1} parent=31 // pred_region
          %s323 = sand.u32 %s22, 1
          %s324 = scalar_lea.sflag [#allocation7], %s323
          %s325 = sand.u32 %s96, 1
          %s326 = smul.addr %s325, 2
          %s327 = scalar_lea.vmem [#allocation8], %s326
          %s328 = smul.u32 2, %s30
          %330 = vsyncadd %s324, 0
          %s331 = scalar_lea.hbm %s2, %s328
          %s333 = sshll.u32 %s331, 4
          %s334 = int_to_ptr.hbm [resolvable:$true] %s333
          %s335 = sshll.u32 %s327, 4
          %s336 = int_to_ptr.vmem [resolvable:$true] %s335
          %338 = dma.hbm_to_vmem [thread:$0]  %s334, 32, %s336, %s324
        $region40: #{tpu_custom_call.1} parent=31 // pred_fallthru
          _
        // Predicated region
        $region41: #{tpu_custom_call.1} parent=31 // pred_check
          %p339 = pneg %p132
        $region42: #{tpu_custom_call.1} parent=31 // pred_check_branch
          %341 = sbr.rel (%p339) target = $region44
        $region43: #{tpu_custom_call.1} parent=31 // pred_region
          %s342 = sand.u32 %s22, 1
          %s343 = scalar_lea.sflag [#allocation10], %s342
          %s344 = sand.u32 %s122, 1
          %s345 = smul.addr %s344, 1024
          %s346 = scalar_lea.vmem [#allocation9], %s345
          %s347 = smul.u32 32, %s30
          %349 = vsyncadd %s343, 0
          %s350 = smul.addr %s347, 8
          %s351 = smul.addr %s350, 4
          %s352 = scalar_lea.hbm %s3, %s351
          %s353 = sshll.u32 %s352, 4
          %s354 = int_to_ptr.hbm [resolvable:$true] %s353
          %s355 = sshll.u32 %s346, 4
          %s356 = int_to_ptr.vmem [resolvable:$true] %s355
          %361 = dma.hbm_to_vmem [thread:$0]  %s354, 16384, %s356, %s343, 512, 512, 32
        $region44: #{tpu_custom_call.1} parent=31 // pred_fallthru
          _
      $region32: #{tpu_custom_call.1} parent=5 // pred_fallthru
        _
      %p362 = scmp.le.s32.totalorder 1, %s22
      %p363 = scmp.lt.s32.totalorder %s22, 5
      %p364 = pnand %p362, %p363
      %p365 = pneg %p364
      // Predicated region
      $region45: #{tpu_custom_call.1} parent=5 // pred_check
        _
      $region46: #{tpu_custom_call.1} parent=5 // pred_check_branch
        %367 = sbr.rel (%p364) target = $region48
      $region47: #{tpu_custom_call.1} parent=5 // pred_region
        %s368 = ssub.s32 %s22, 1
        // Predicated region
        $region49: #{tpu_custom_call.1} parent=47 // pred_check
          %p369 = pneg %p60
        $region50: #{tpu_custom_call.1} parent=47 // pred_check_branch
          %371 = sbr.rel (%p369) target = $region52
        $region51: #{tpu_custom_call.1} parent=47 // pred_region
          %373 = dma.done [#allocation4], 64
        $region52: #{tpu_custom_call.1} parent=47 // pred_fallthru
          _
        %s374 = sand.u32 %s27, 1
        %s375 = scalar_lea.sflag [#allocation7], %s374
        %s376 = sand.u32 %s73, 1
        %s377 = smul.addr %s376, 32
        %s378 = scalar_lea.vmem [#allocation6], %s377
        // Predicated region
        $region53: #{tpu_custom_call.1} parent=47 // pred_check
          %p379 = pneg %p86
        $region54: #{tpu_custom_call.1} parent=47 // pred_check_branch
          %381 = sbr.rel (%p379) target = $region56
        $region55: #{tpu_custom_call.1} parent=47 // pred_region
          %383 = dma.done %s375, 512
        $region56: #{tpu_custom_call.1} parent=47 // pred_fallthru
          _
        %s384 = sand.u32 %s27, 1
        %s385 = scalar_lea.sflag [#allocation7], %s384
        %s386 = sand.u32 %s99, 1
        %s387 = smul.addr %s386, 2
        %s388 = scalar_lea.vmem [#allocation8], %s387
        // Predicated region
        $region57: #{tpu_custom_call.1} parent=47 // pred_check
          %p389 = pneg %p112
        $region58: #{tpu_custom_call.1} parent=47 // pred_check_branch
          %391 = sbr.rel (%p389) target = $region60
        $region59: #{tpu_custom_call.1} parent=47 // pred_region
          %393 = dma.done %s385, 32
        $region60: #{tpu_custom_call.1} parent=47 // pred_fallthru
          _
        %s394 = sand.u32 %s27, 1
        %s395 = scalar_lea.sflag [#allocation10], %s394
        %s396 = sand.u32 %s125, 1
        %s397 = smul.addr %s396, 1024
        %s398 = scalar_lea.vmem [#allocation9], %s397
        // Predicated region
        $region61: #{tpu_custom_call.1} parent=47 // pred_check
          %p399 = pneg %p138
        $region62: #{tpu_custom_call.1} parent=47 // pred_check_branch
          %401 = sbr.rel (%p399) target = $region64
        $region63: #{tpu_custom_call.1} parent=47 // pred_region
          %403 = dma.done %s395, 16384
        $region64: #{tpu_custom_call.1} parent=47 // pred_fallthru
          _
        // Predicated region
        $region65: #{tpu_custom_call.1} parent=47 // pred_check
          %p404 = pneg %p159
        $region66: #{tpu_custom_call.1} parent=47 // pred_check_branch
          %406 = sbr.rel (%p404) target = $region68
        $region67: #{tpu_custom_call.1} parent=47 // pred_region
          %408 = dma.done [#allocation10], 128
        $region68: #{tpu_custom_call.1} parent=47 // pred_fallthru
          _
        // Predicated region
        $region69: #{tpu_custom_call.1} parent=47 // pred_check
          %p409 = pneg %p180
        $region70: #{tpu_custom_call.1} parent=47 // pred_check_branch
          %411 = sbr.rel (%p409) target = $region72
        $region71: #{tpu_custom_call.1} parent=47 // pred_region
          %413 = dma.done [#allocation13], 8192
        $region72: #{tpu_custom_call.1} parent=47 // pred_fallthru
          _
        // Predicated region
        $region73: #{tpu_custom_call.1} parent=47 // pred_check
          %p414 = pneg %p201
        $region74: #{tpu_custom_call.1} parent=47 // pred_check_branch
          %416 = sbr.rel (%p414) target = $region76
        $region75: #{tpu_custom_call.1} parent=47 // pred_region
          %418 = dma.done [#allocation13], 16
        $region76: #{tpu_custom_call.1} parent=47 // pred_fallthru
          _
        %p419 = pneg %p60
        %p420 = pneg %p57
        %s421 = sand.u32 %s27, 1
        %s422 = scalar_lea.sflag [#allocation7], %s421
        %s423 = sand.u32 %s73, 1
        %s424 = smul.addr %s423, 32
        %s425 = scalar_lea.vmem [#allocation6], %s424
        %p426 = pneg %p86
        %p427 = pneg %p83
        %s428 = sand.u32 %s27, 1
        %s429 = scalar_lea.sflag [#allocation7], %s428
        %s430 = sand.u32 %s99, 1
        %s431 = smul.addr %s430, 2
        %s432 = scalar_lea.vmem [#allocation8], %s431
        %p433 = pneg %p112
        %p434 = pneg %p109
        %s435 = sand.u32 %s27, 1
        %s436 = scalar_lea.sflag [#allocation10], %s435
        %s437 = sand.u32 %s125, 1
        %s438 = smul.addr %s437, 1024
        %s439 = scalar_lea.vmem [#allocation9], %s438
        %p440 = pneg %p138
        %p441 = pneg %p135
        %p442 = pneg %p159
        %p443 = pneg %p156
        %p444 = pneg %p180
        %p445 = pneg %p177
        %p446 = pneg %p201
        %p447 = pneg %p198
        %p448 = pneg %p227
        %p449 = pneg %p224
        %s450 = smul.u32 2, %s32
        %s451 = smul.u32 2, %s32
        %s452 = smul.u32 32, %s32
        %p454 = scmp.eq.s32.totalorder %s32, 0
        // Predicated region
        $region77: #{tpu_custom_call.1} parent=47 // pred_check
          %p455 = pneg %p454
        $region78: #{tpu_custom_call.1} parent=47 // pred_check_branch
          %457 = sbr.rel (%p455) target = $region80
        $region79: #{tpu_custom_call.1} parent=47 // pred_region
          %v458 = vld [vmem:[#allocation11] sm:$0xff]
          %v460 = vperm.slane %v458, 0
          %v461 = vperm.slane %v458, 1
          %v462 = vperm.slane %v458, 2
          %v463 = vperm.slane %v458, 3
          %v464 = vperm.slane %v458, 4
          %v465 = vperm.slane %v458, 5
          %v466 = vperm.slane %v458, 6
          %v467 = vperm.slane %v458, 7
          %v476 = vadd.f32 %v460, 0.0
          %v477 = vadd.f32 %v461, 0.0
          %v478 = vadd.f32 %v462, 0.0
          %v479 = vadd.f32 %v463, 0.0
          %v480 = vadd.f32 %v464, 0.0
          %v481 = vadd.f32 %v465, 0.0
          %v482 = vadd.f32 %v466, 0.0
          %v483 = vadd.f32 %v467, 0.0
          %484 = vst [vmem:[#allocation2] sm:$0xff] %v476
          %485 = vst [vmem:[#allocation2 + $0x8] sm:$0xff] %v477
          %486 = vst [vmem:[#allocation2 + $0x10] sm:$0xff] %v478
          %487 = vst [vmem:[#allocation2 + $0x18] sm:$0xff] %v479
          %488 = vst [vmem:[#allocation2 + $0x20] sm:$0xff] %v480
          %489 = vst [vmem:[#allocation2 + $0x28] sm:$0xff] %v481
          %490 = vst [vmem:[#allocation2 + $0x30] sm:$0xff] %v482
          %491 = vst [vmem:[#allocation2 + $0x38] sm:$0xff] %v483
        $region80: #{tpu_custom_call.1} parent=47 // pred_fallthru
          _
        %v492 = vld [vmem:[#allocation3] sm:$0xf]
        %v493 = vld [vmem:[%s378] sm:$0xff]
        %v494 = vld [vmem:[%s378 + $0x8] sm:$0xff]
        %v495 = vld [vmem:[%s378 + $0x10] sm:$0xff]
        %v496 = vld [vmem:[%s378 + $0x18] sm:$0xff]
        %v497 = vld [vmem:[%s388] sm:$0x3]
        %v499 = vperm.slane %v497, 0
        %v500 = vperm.slane %v497, 1
        %v507 = vunpack.c.l.b16 %v493
        %v508 = vunpack.c.h.b16 %v493
        %v509 = vunpack.c.l.b16 %v494
        %v510 = vunpack.c.h.b16 %v494
        %v511 = vunpack.c.l.b16 %v495
        %v512 = vunpack.c.h.b16 %v495
        %v513 = vunpack.c.l.b16 %v496
        %v514 = vunpack.c.h.b16 %v496
        %v515 = vpack.c.b16 %v509, %v507
        %v516 = vpack.c.b16 %v510, %v508
        %v517 = vpack.c.b16 %v513, %v511
        %v518 = vpack.c.b16 %v514, %v512
        %vm523 = vcmask 261120
        %v525 = vsel %vm523, %v492, 0
        %527 = vmatpush.bf16.msra.mxu0 0
        %528 = vmatpush.bf16.msra.mxu0 0
        %529 = vmatpush.bf16.msra.mxu0 0
        %530 = vmatpush.bf16.msra.mxu0 0
        %531 = vmatpush.bf16.msra.mxu0 0
        %532 = vmatpush.bf16.msra.mxu0 0
        %533 = vmatpush.bf16.msra.mxu0 %v517
        %534 = vmatpush.bf16.msra.mxu0 %v515
        %535 = vmatmul.bf16.gmra.mxu0 %v525
        %v536 = vpop.f32.mrf.mxu0
        %v537 = vadd.f32 %v499, %v536
        %v538 = vpop.f32.mrf.mxu0
        %539 = vdwg.mxu0
        %540 = vmatpush.bf16.msra.mxu0 0
        %541 = vmatpush.bf16.msra.mxu0 0
        %542 = vmatpush.bf16.msra.mxu0 0
        %543 = vmatpush.bf16.msra.mxu0 0
        %544 = vmatpush.bf16.msra.mxu0 0
        %545 = vmatpush.bf16.msra.mxu0 0
        %546 = vmatpush.bf16.msra.mxu0 %v518
        %547 = vmatpush.bf16.msra.mxu0 %v516
        %548 = vmatmul.bf16.gmra.mxu0 %v525
        %v549 = vpop.f32.mrf.mxu0
        %v550 = vadd.f32 %v500, %v549
        %v551 = vpop.f32.mrf.mxu0
        %552 = vdwg.mxu0
        %v553 = vmax.f32 %v537, 0.0
        %v554 = vmax.f32 %v550, 0.0
        %v555 = vld [vmem:[#allocation2] sm:$0xff]
        %v556 = vld [vmem:[#allocation2 + $0x8] sm:$0xff]
        %v557 = vld [vmem:[#allocation2 + $0x10] sm:$0xff]
        %v558 = vld [vmem:[#allocation2 + $0x18] sm:$0xff]
        %v559 = vld [vmem:[#allocation2 + $0x20] sm:$0xff]
        %v560 = vld [vmem:[#allocation2 + $0x28] sm:$0xff]
        %v561 = vld [vmem:[#allocation2 + $0x30] sm:$0xff]
        %v562 = vld [vmem:[#allocation2 + $0x38] sm:$0xff]
        %v563 = vpack.c.bf16 %v553, %v553
        %v564 = vpack.c.bf16 %v554, %v554
        %v565 = vld [vmem:[%s398] sm:$0xff]
        %v566 = vld [vmem:[%s398 + $0x8] sm:$0xff]
        %v567 = vld [vmem:[%s398 + $0x10] sm:$0xff]
        %v568 = vld [vmem:[%s398 + $0x18] sm:$0xff]
        %v569 = vld [vmem:[%s398 + $0x20] sm:$0xff]
        %v570 = vld [vmem:[%s398 + $0x28] sm:$0xff]
        %v571 = vld [vmem:[%s398 + $0x30] sm:$0xff]
        %v572 = vld [vmem:[%s398 + $0x38] sm:$0xff]
        %v573 = vld [vmem:[%s398 + $0x40] sm:$0xff]
        %v574 = vld [vmem:[%s398 + $0x48] sm:$0xff]
        %v575 = vld [vmem:[%s398 + $0x50] sm:$0xff]
        %v576 = vld [vmem:[%s398 + $0x58] sm:$0xff]
        %v577 = vld [vmem:[%s398 + $0x60] sm:$0xff]
        %v578 = vld [vmem:[%s398 + $0x68] sm:$0xff]
        %v579 = vld [vmem:[%s398 + $0x70] sm:$0xff]
        %v580 = vld [vmem:[%s398 + $0x78] sm:$0xff]
        %v581 = vld [vmem:[%s398 + $0x80] sm:$0xff]
        %v582 = vld [vmem:[%s398 + $0x88] sm:$0xff]
        %v583 = vld [vmem:[%s398 + $0x90] sm:$0xff]
        %v584 = vld [vmem:[%s398 + $0x98] sm:$0xff]
        %v585 = vld [vmem:[%s398 + $0xa0] sm:$0xff]
        %v586 = vld [vmem:[%s398 + $0xa8] sm:$0xff]
        %v587 = vld [vmem:[%s398 + $0xb0] sm:$0xff]
        %v588 = vld [vmem:[%s398 + $0xb8] sm:$0xff]
        %v589 = vld [vmem:[%s398 + $0xc0] sm:$0xff]
        %v590 = vld [vmem:[%s398 + $0xc8] sm:$0xff]
        %v591 = vld [vmem:[%s398 + $0xd0] sm:$0xff]
        %v592 = vld [vmem:[%s398 + $0xd8] sm:$0xff]
        %v593 = vld [vmem:[%s398 + $0xe0] sm:$0xff]
        %v594 = vld [vmem:[%s398 + $0xe8] sm:$0xff]
        %v595 = vld [vmem:[%s398 + $0xf0] sm:$0xff]
        %v596 = vld [vmem:[%s398 + $0xf8] sm:$0xff]
        %v597 = vld [vmem:[%s398 + $0x100] sm:$0xff]
        %v598 = vld [vmem:[%s398 + $0x108] sm:$0xff]
        %v599 = vld [vmem:[%s398 + $0x110] sm:$0xff]
        %v600 = vld [vmem:[%s398 + $0x118] sm:$0xff]
        %v601 = vld [vmem:[%s398 + $0x120] sm:$0xff]
        %v602 = vld [vmem:[%s398 + $0x128] sm:$0xff]
        %v603 = vld [vmem:[%s398 + $0x130] sm:$0xff]
        %v604 = vld [vmem:[%s398 + $0x138] sm:$0xff]
        %v605 = vld [vmem:[%s398 + $0x140] sm:$0xff]
        %v606 = vld [vmem:[%s398 + $0x148] sm:$0xff]
        %v607 = vld [vmem:[%s398 + $0x150] sm:$0xff]
        %v608 = vld [vmem:[%s398 + $0x158] sm:$0xff]
        %v609 = vld [vmem:[%s398 + $0x160] sm:$0xff]
        %v610 = vld [vmem:[%s398 + $0x168] sm:$0xff]
        %v611 = vld [vmem:[%s398 + $0x170] sm:$0xff]
        %v612 = vld [vmem:[%s398 + $0x178] sm:$0xff]
        %v613 = vld [vmem:[%s398 + $0x180] sm:$0xff]
        %v614 = vld [vmem:[%s398 + $0x188] sm:$0xff]
        %v615 = vld [vmem:[%s398 + $0x190] sm:$0xff]
        %v616 = vld [vmem:[%s398 + $0x198] sm:$0xff]
        %v617 = vld [vmem:[%s398 + $0x1a0] sm:$0xff]
        %v618 = vld [vmem:[%s398 + $0x1a8] sm:$0xff]
        %v619 = vld [vmem:[%s398 + $0x1b0] sm:$0xff]
        %v620 = vld [vmem:[%s398 + $0x1b8] sm:$0xff]
        %v621 = vld [vmem:[%s398 + $0x1c0] sm:$0xff]
        %v622 = vld [vmem:[%s398 + $0x1c8] sm:$0xff]
        %v623 = vld [vmem:[%s398 + $0x1d0] sm:$0xff]
        %v624 = vld [vmem:[%s398 + $0x1d8] sm:$0xff]
        %v625 = vld [vmem:[%s398 + $0x1e0] sm:$0xff]
        %v626 = vld [vmem:[%s398 + $0x1e8] sm:$0xff]
        %v627 = vld [vmem:[%s398 + $0x1f0] sm:$0xff]
        %v628 = vld [vmem:[%s398 + $0x1f8] sm:$0xff]
        %v629 = vld [vmem:[%s398 + $0x200] sm:$0xff]
        %v630 = vld [vmem:[%s398 + $0x208] sm:$0xff]
        %v631 = vld [vmem:[%s398 + $0x210] sm:$0xff]
        %v632 = vld [vmem:[%s398 + $0x218] sm:$0xff]
        %v633 = vld [vmem:[%s398 + $0x220] sm:$0xff]
        %v634 = vld [vmem:[%s398 + $0x228] sm:$0xff]
        %v635 = vld [vmem:[%s398 + $0x230] sm:$0xff]
        %v636 = vld [vmem:[%s398 + $0x238] sm:$0xff]
        %v637 = vld [vmem:[%s398 + $0x240] sm:$0xff]
        %v638 = vld [vmem:[%s398 + $0x248] sm:$0xff]
        %v639 = vld [vmem:[%s398 + $0x250] sm:$0xff]
        %v640 = vld [vmem:[%s398 + $0x258] sm:$0xff]
        %v641 = vld [vmem:[%s398 + $0x260] sm:$0xff]
        %v642 = vld [vmem:[%s398 + $0x268] sm:$0xff]
        %v643 = vld [vmem:[%s398 + $0x270] sm:$0xff]
        %v644 = vld [vmem:[%s398 + $0x278] sm:$0xff]
        %v645 = vld [vmem:[%s398 + $0x280] sm:$0xff]
        %v646 = vld [vmem:[%s398 + $0x288] sm:$0xff]
        %v647 = vld [vmem:[%s398 + $0x290] sm:$0xff]
        %v648 = vld [vmem:[%s398 + $0x298] sm:$0xff]
        %v649 = vld [vmem:[%s398 + $0x2a0] sm:$0xff]
        %v650 = vld [vmem:[%s398 + $0x2a8] sm:$0xff]
        %v651 = vld [vmem:[%s398 + $0x2b0] sm:$0xff]
        %v652 = vld [vmem:[%s398 + $0x2b8] sm:$0xff]
        %v653 = vld [vmem:[%s398 + $0x2c0] sm:$0xff]
        %v654 = vld [vmem:[%s398 + $0x2c8] sm:$0xff]
        %v655 = vld [vmem:[%s398 + $0x2d0] sm:$0xff]
        %v656 = vld [vmem:[%s398 + $0x2d8] sm:$0xff]
        %v657 = vld [vmem:[%s398 + $0x2e0] sm:$0xff]
        %v658 = vld [vmem:[%s398 + $0x2e8] sm:$0xff]
        %v659 = vld [vmem:[%s398 + $0x2f0] sm:$0xff]
        %v660 = vld [vmem:[%s398 + $0x2f8] sm:$0xff]
        %v661 = vld [vmem:[%s398 + $0x300] sm:$0xff]
        %v662 = vld [vmem:[%s398 + $0x308] sm:$0xff]
        %v663 = vld [vmem:[%s398 + $0x310] sm:$0xff]
        %v664 = vld [vmem:[%s398 + $0x318] sm:$0xff]
        %v665 = vld [vmem:[%s398 + $0x320] sm:$0xff]
        %v666 = vld [vmem:[%s398 + $0x328] sm:$0xff]
        %v667 = vld [vmem:[%s398 + $0x330] sm:$0xff]
        %v668 = vld [vmem:[%s398 + $0x338] sm:$0xff]
        %v669 = vld [vmem:[%s398 + $0x340] sm:$0xff]
        %v670 = vld [vmem:[%s398 + $0x348] sm:$0xff]
        %v671 = vld [vmem:[%s398 + $0x350] sm:$0xff]
        %v672 = vld [vmem:[%s398 + $0x358] sm:$0xff]
        %v673 = vld [vmem:[%s398 + $0x360] sm:$0xff]
        %v674 = vld [vmem:[%s398 + $0x368] sm:$0xff]
        %v675 = vld [vmem:[%s398 + $0x370] sm:$0xff]
        %v676 = vld [vmem:[%s398 + $0x378] sm:$0xff]
        %v677 = vld [vmem:[%s398 + $0x380] sm:$0xff]
        %v678 = vld [vmem:[%s398 + $0x388] sm:$0xff]
        %v679 = vld [vmem:[%s398 + $0x390] sm:$0xff]
        %v680 = vld [vmem:[%s398 + $0x398] sm:$0xff]
        %v681 = vld [vmem:[%s398 + $0x3a0] sm:$0xff]
        %v682 = vld [vmem:[%s398 + $0x3a8] sm:$0xff]
        %v683 = vld [vmem:[%s398 + $0x3b0] sm:$0xff]
        %v684 = vld [vmem:[%s398 + $0x3b8] sm:$0xff]
        %v685 = vld [vmem:[%s398 + $0x3c0] sm:$0xff]
        %v686 = vld [vmem:[%s398 + $0x3c8] sm:$0xff]
        %v687 = vld [vmem:[%s398 + $0x3d0] sm:$0xff]
        %v688 = vld [vmem:[%s398 + $0x3d8] sm:$0xff]
        %v689 = vld [vmem:[%s398 + $0x3e0] sm:$0xff]
        %v690 = vld [vmem:[%s398 + $0x3e8] sm:$0xff]
        %v691 = vld [vmem:[%s398 + $0x3f0] sm:$0xff]
        %v692 = vld [vmem:[%s398 + $0x3f8] sm:$0xff]
        %v821 = vunpack.c.l.b16 %v565
        %v822 = vunpack.c.h.b16 %v565
        %v823 = vunpack.c.l.b16 %v566
        %v824 = vunpack.c.h.b16 %v566
        %v825 = vunpack.c.l.b16 %v567
        %v826 = vunpack.c.h.b16 %v567
        %v827 = vunpack.c.l.b16 %v568
        %v828 = vunpack.c.h.b16 %v568
        %v829 = vunpack.c.l.b16 %v569
        %v830 = vunpack.c.h.b16 %v569
        %v831 = vunpack.c.l.b16 %v570
        %v832 = vunpack.c.h.b16 %v570
        %v833 = vunpack.c.l.b16 %v571
        %v834 = vunpack.c.h.b16 %v571
        %v835 = vunpack.c.l.b16 %v572
        %v836 = vunpack.c.h.b16 %v572
        %v837 = vunpack.c.l.b16 %v573
        %v838 = vunpack.c.h.b16 %v573
        %v839 = vunpack.c.l.b16 %v574
        %v840 = vunpack.c.h.b16 %v574
        %v841 = vunpack.c.l.b16 %v575
        %v842 = vunpack.c.h.b16 %v575
        %v843 = vunpack.c.l.b16 %v576
        %v844 = vunpack.c.h.b16 %v576
        %v845 = vunpack.c.l.b16 %v577
        %v846 = vunpack.c.h.b16 %v577
        %v847 = vunpack.c.l.b16 %v578
        %v848 = vunpack.c.h.b16 %v578
        %v849 = vunpack.c.l.b16 %v579
        %v850 = vunpack.c.h.b16 %v579
        %v851 = vunpack.c.l.b16 %v580
        %v852 = vunpack.c.h.b16 %v580
        %v853 = vunpack.c.l.b16 %v581
        %v854 = vunpack.c.h.b16 %v581
        %v855 = vunpack.c.l.b16 %v582
        %v856 = vunpack.c.h.b16 %v582
        %v857 = vunpack.c.l.b16 %v583
        %v858 = vunpack.c.h.b16 %v583
        %v859 = vunpack.c.l.b16 %v584
        %v860 = vunpack.c.h.b16 %v584
        %v861 = vunpack.c.l.b16 %v585
        %v862 = vunpack.c.h.b16 %v585
        %v863 = vunpack.c.l.b16 %v586
        %v864 = vunpack.c.h.b16 %v586
        %v865 = vunpack.c.l.b16 %v587
        %v866 = vunpack.c.h.b16 %v587
        %v867 = vunpack.c.l.b16 %v588
        %v868 = vunpack.c.h.b16 %v588
        %v869 = vunpack.c.l.b16 %v589
        %v870 = vunpack.c.h.b16 %v589
        %v871 = vunpack.c.l.b16 %v590
        %v872 = vunpack.c.h.b16 %v590
        %v873 = vunpack.c.l.b16 %v591
        %v874 = vunpack.c.h.b16 %v591
        %v875 = vunpack.c.l.b16 %v592
        %v876 = vunpack.c.h.b16 %v592
        %v877 = vunpack.c.l.b16 %v593
        %v878 = vunpack.c.h.b16 %v593
        %v879 = vunpack.c.l.b16 %v594
        %v880 = vunpack.c.h.b16 %v594
        %v881 = vunpack.c.l.b16 %v595
        %v882 = vunpack.c.h.b16 %v595
        %v883 = vunpack.c.l.b16 %v596
        %v884 = vunpack.c.h.b16 %v596
        %v885 = vunpack.c.l.b16 %v597
        %v886 = vunpack.c.h.b16 %v597
        %v887 = vunpack.c.l.b16 %v598
        %v888 = vunpack.c.h.b16 %v598
        %v889 = vunpack.c.l.b16 %v599
        %v890 = vunpack.c.h.b16 %v599
        %v891 = vunpack.c.l.b16 %v600
        %v892 = vunpack.c.h.b16 %v600
        %v893 = vunpack.c.l.b16 %v601
        %v894 = vunpack.c.h.b16 %v601
        %v895 = vunpack.c.l.b16 %v602
        %v896 = vunpack.c.h.b16 %v602
        %v897 = vunpack.c.l.b16 %v603
        %v898 = vunpack.c.h.b16 %v603
        %v899 = vunpack.c.l.b16 %v604
        %v900 = vunpack.c.h.b16 %v604
        %v901 = vunpack.c.l.b16 %v605
        %v902 = vunpack.c.h.b16 %v605
        %v903 = vunpack.c.l.b16 %v606
        %v904 = vunpack.c.h.b16 %v606
        %v905 = vunpack.c.l.b16 %v607
        %v906 = vunpack.c.h.b16 %v607
        %v907 = vunpack.c.l.b16 %v608
        %v908 = vunpack.c.h.b16 %v608
        %v909 = vunpack.c.l.b16 %v609
        %v910 = vunpack.c.h.b16 %v609
        %v911 = vunpack.c.l.b16 %v610
        %v912 = vunpack.c.h.b16 %v610
        %v913 = vunpack.c.l.b16 %v611
        %v914 = vunpack.c.h.b16 %v611
        %v915 = vunpack.c.l.b16 %v612
        %v916 = vunpack.c.h.b16 %v612
        %v917 = vunpack.c.l.b16 %v613
        %v918 = vunpack.c.h.b16 %v613
        %v919 = vunpack.c.l.b16 %v614
        %v920 = vunpack.c.h.b16 %v614
        %v921 = vunpack.c.l.b16 %v615
        %v922 = vunpack.c.h.b16 %v615
        %v923 = vunpack.c.l.b16 %v616
        %v924 = vunpack.c.h.b16 %v616
        %v925 = vunpack.c.l.b16 %v617
        %v926 = vunpack.c.h.b16 %v617
        %v927 = vunpack.c.l.b16 %v618
        %v928 = vunpack.c.h.b16 %v618
        %v929 = vunpack.c.l.b16 %v619
        %v930 = vunpack.c.h.b16 %v619
        %v931 = vunpack.c.l.b16 %v620
        %v932 = vunpack.c.h.b16 %v620
        %v933 = vunpack.c.l.b16 %v621
        %v934 = vunpack.c.h.b16 %v621
        %v935 = vunpack.c.l.b16 %v622
        %v936 = vunpack.c.h.b16 %v622
        %v937 = vunpack.c.l.b16 %v623
        %v938 = vunpack.c.h.b16 %v623
        %v939 = vunpack.c.l.b16 %v624
        %v940 = vunpack.c.h.b16 %v624
        %v941 = vunpack.c.l.b16 %v625
        %v942 = vunpack.c.h.b16 %v625
        %v943 = vunpack.c.l.b16 %v626
        %v944 = vunpack.c.h.b16 %v626
        %v945 = vunpack.c.l.b16 %v627
        %v946 = vunpack.c.h.b16 %v627
        %v947 = vunpack.c.l.b16 %v628
        %v948 = vunpack.c.h.b16 %v628
        %v949 = vunpack.c.l.b16 %v629
        %v950 = vunpack.c.h.b16 %v629
        %v951 = vunpack.c.l.b16 %v630
        %v952 = vunpack.c.h.b16 %v630
        %v953 = vunpack.c.l.b16 %v631
        %v954 = vunpack.c.h.b16 %v631
        %v955 = vunpack.c.l.b16 %v632
        %v956 = vunpack.c.h.b16 %v632
        %v957 = vunpack.c.l.b16 %v633
        %v958 = vunpack.c.h.b16 %v633
        %v959 = vunpack.c.l.b16 %v634
        %v960 = vunpack.c.h.b16 %v634
        %v961 = vunpack.c.l.b16 %v635
        %v962 = vunpack.c.h.b16 %v635
        %v963 = vunpack.c.l.b16 %v636
        %v964 = vunpack.c.h.b16 %v636
        %v965 = vunpack.c.l.b16 %v637
        %v966 = vunpack.c.h.b16 %v637
        %v967 = vunpack.c.l.b16 %v638
        %v968 = vunpack.c.h.b16 %v638
        %v969 = vunpack.c.l.b16 %v639
        %v970 = vunpack.c.h.b16 %v639
        %v971 = vunpack.c.l.b16 %v640
        %v972 = vunpack.c.h.b16 %v640
        %v973 = vunpack.c.l.b16 %v641
        %v974 = vunpack.c.h.b16 %v641
        %v975 = vunpack.c.l.b16 %v642
        %v976 = vunpack.c.h.b16 %v642
        %v977 = vunpack.c.l.b16 %v643
        %v978 = vunpack.c.h.b16 %v643
        %v979 = vunpack.c.l.b16 %v644
        %v980 = vunpack.c.h.b16 %v644
        %v981 = vunpack.c.l.b16 %v645
        %v982 = vunpack.c.h.b16 %v645
        %v983 = vunpack.c.l.b16 %v646
        %v984 = vunpack.c.h.b16 %v646
        %v985 = vunpack.c.l.b16 %v647
        %v986 = vunpack.c.h.b16 %v647
        %v987 = vunpack.c.l.b16 %v648
        %v988 = vunpack.c.h.b16 %v648
        %v989 = vunpack.c.l.b16 %v649
        %v990 = vunpack.c.h.b16 %v649
        %v991 = vunpack.c.l.b16 %v650
        %v992 = vunpack.c.h.b16 %v650
        %v993 = vunpack.c.l.b16 %v651
        %v994 = vunpack.c.h.b16 %v651
        %v995 = vunpack.c.l.b16 %v652
        %v996 = vunpack.c.h.b16 %v652
        %v997 = vunpack.c.l.b16 %v653
        %v998 = vunpack.c.h.b16 %v653
        %v999 = vunpack.c.l.b16 %v654
        %v1000 = vunpack.c.h.b16 %v654
        %v1001 = vunpack.c.l.b16 %v655
        %v1002 = vunpack.c.h.b16 %v655
        %v1003 = vunpack.c.l.b16 %v656
        %v1004 = vunpack.c.h.b16 %v656
        %v1005 = vunpack.c.l.b16 %v657
        %v1006 = vunpack.c.h.b16 %v657
        %v1007 = vunpack.c.l.b16 %v658
        %v1008 = vunpack.c.h.b16 %v658
        %v1009 = vunpack.c.l.b16 %v659
        %v1010 = vunpack.c.h.b16 %v659
        %v1011 = vunpack.c.l.b16 %v660
        %v1012 = vunpack.c.h.b16 %v660
        %v1013 = vunpack.c.l.b16 %v661
        %v1014 = vunpack.c.h.b16 %v661
        %v1015 = vunpack.c.l.b16 %v662
        %v1016 = vunpack.c.h.b16 %v662
        %v1017 = vunpack.c.l.b16 %v663
        %v1018 = vunpack.c.h.b16 %v663
        %v1019 = vunpack.c.l.b16 %v664
        %v1020 = vunpack.c.h.b16 %v664
        %v1021 = vunpack.c.l.b16 %v665
        %v1022 = vunpack.c.h.b16 %v665
        %v1023 = vunpack.c.l.b16 %v666
        %v1024 = vunpack.c.h.b16 %v666
        %v1025 = vunpack.c.l.b16 %v667
        %v1026 = vunpack.c.h.b16 %v667
        %v1027 = vunpack.c.l.b16 %v668
        %v1028 = vunpack.c.h.b16 %v668
        %v1029 = vunpack.c.l.b16 %v669
        %v1030 = vunpack.c.h.b16 %v669
        %v1031 = vunpack.c.l.b16 %v670
        %v1032 = vunpack.c.h.b16 %v670
        %v1033 = vunpack.c.l.b16 %v671
        %v1034 = vunpack.c.h.b16 %v671
        %v1035 = vunpack.c.l.b16 %v672
        %v1036 = vunpack.c.h.b16 %v672
        %v1037 = vunpack.c.l.b16 %v673
        %v1038 = vunpack.c.h.b16 %v673
        %v1039 = vunpack.c.l.b16 %v674
        %v1040 = vunpack.c.h.b16 %v674
        %v1041 = vunpack.c.l.b16 %v675
        %v1042 = vunpack.c.h.b16 %v675
        %v1043 = vunpack.c.l.b16 %v676
        %v1044 = vunpack.c.h.b16 %v676
        %v1045 = vunpack.c.l.b16 %v677
        %v1046 = vunpack.c.h.b16 %v677
        %v1047 = vunpack.c.l.b16 %v678
        %v1048 = vunpack.c.h.b16 %v678
        %v1049 = vunpack.c.l.b16 %v679
        %v1050 = vunpack.c.h.b16 %v679
        %v1051 = vunpack.c.l.b16 %v680
        %v1052 = vunpack.c.h.b16 %v680
        %v1053 = vunpack.c.l.b16 %v681
        %v1054 = vunpack.c.h.b16 %v681
        %v1055 = vunpack.c.l.b16 %v682
        %v1056 = vunpack.c.h.b16 %v682
        %v1057 = vunpack.c.l.b16 %v683
        %v1058 = vunpack.c.h.b16 %v683
        %v1059 = vunpack.c.l.b16 %v684
        %v1060 = vunpack.c.h.b16 %v684
        %v1061 = vunpack.c.l.b16 %v685
        %v1062 = vunpack.c.h.b16 %v685
        %v1063 = vunpack.c.l.b16 %v686
        %v1064 = vunpack.c.h.b16 %v686
        %v1065 = vunpack.c.l.b16 %v687
        %v1066 = vunpack.c.h.b16 %v687
        %v1067 = vunpack.c.l.b16 %v688
        %v1068 = vunpack.c.h.b16 %v688
        %v1069 = vunpack.c.l.b16 %v689
        %v1070 = vunpack.c.h.b16 %v689
        %v1071 = vunpack.c.l.b16 %v690
        %v1072 = vunpack.c.h.b16 %v690
        %v1073 = vunpack.c.l.b16 %v691
        %v1074 = vunpack.c.h.b16 %v691
        %v1075 = vunpack.c.l.b16 %v692
        %v1076 = vunpack.c.h.b16 %v692
        %v1077 = vpack.c.b16 %v829, %v821
        %v1078 = vpack.c.b16 %v830, %v822
        %v1079 = vpack.c.b16 %v831, %v823
        %v1080 = vpack.c.b16 %v832, %v824
        %v1081 = vpack.c.b16 %v833, %v825
        %v1082 = vpack.c.b16 %v834, %v826
        %v1083 = vpack.c.b16 %v835, %v827
        %v1084 = vpack.c.b16 %v836, %v828
        %v1085 = vpack.c.b16 %v845, %v837
        %v1086 = vpack.c.b16 %v846, %v838
        %v1087 = vpack.c.b16 %v847, %v839
        %v1088 = vpack.c.b16 %v848, %v840
        %v1089 = vpack.c.b16 %v849, %v841
        %v1090 = vpack.c.b16 %v850, %v842
        %v1091 = vpack.c.b16 %v851, %v843
        %v1092 = vpack.c.b16 %v852, %v844
        %v1093 = vpack.c.b16 %v861, %v853
        %v1094 = vpack.c.b16 %v862, %v854
        %v1095 = vpack.c.b16 %v863, %v855
        %v1096 = vpack.c.b16 %v864, %v856
        %v1097 = vpack.c.b16 %v865, %v857
        %v1098 = vpack.c.b16 %v866, %v858
        %v1099 = vpack.c.b16 %v867, %v859
        %v1100 = vpack.c.b16 %v868, %v860
        %v1101 = vpack.c.b16 %v877, %v869
        %v1102 = vpack.c.b16 %v878, %v870
        %v1103 = vpack.c.b16 %v879, %v871
        %v1104 = vpack.c.b16 %v880, %v872
        %v1105 = vpack.c.b16 %v881, %v873
        %v1106 = vpack.c.b16 %v882, %v874
        %v1107 = vpack.c.b16 %v883, %v875
        %v1108 = vpack.c.b16 %v884, %v876
        %v1109 = vpack.c.b16 %v893, %v885
        %v1110 = vpack.c.b16 %v894, %v886
        %v1111 = vpack.c.b16 %v895, %v887
        %v1112 = vpack.c.b16 %v896, %v888
        %v1113 = vpack.c.b16 %v897, %v889
        %v1114 = vpack.c.b16 %v898, %v890
        %v1115 = vpack.c.b16 %v899, %v891
        %v1116 = vpack.c.b16 %v900, %v892
        %v1117 = vpack.c.b16 %v909, %v901
        %v1118 = vpack.c.b16 %v910, %v902
        %v1119 = vpack.c.b16 %v911, %v903
        %v1120 = vpack.c.b16 %v912, %v904
        %v1121 = vpack.c.b16 %v913, %v905
        %v1122 = vpack.c.b16 %v914, %v906
        %v1123 = vpack.c.b16 %v915, %v907
        %v1124 = vpack.c.b16 %v916, %v908
        %v1125 = vpack.c.b16 %v925, %v917
        %v1126 = vpack.c.b16 %v926, %v918
        %v1127 = vpack.c.b16 %v927, %v919
        %v1128 = vpack.c.b16 %v928, %v920
        %v1129 = vpack.c.b16 %v929, %v921
        %v1130 = vpack.c.b16 %v930, %v922
        %v1131 = vpack.c.b16 %v931, %v923
        %v1132 = vpack.c.b16 %v932, %v924
        %v1133 = vpack.c.b16 %v941, %v933
        %v1134 = vpack.c.b16 %v942, %v934
        %v1135 = vpack.c.b16 %v943, %v935
        %v1136 = vpack.c.b16 %v944, %v936
        %v1137 = vpack.c.b16 %v945, %v937
        %v1138 = vpack.c.b16 %v946, %v938
        %v1139 = vpack.c.b16 %v947, %v939
        %v1140 = vpack.c.b16 %v948, %v940
        %v1141 = vpack.c.b16 %v957, %v949
        %v1142 = vpack.c.b16 %v958, %v950
        %v1143 = vpack.c.b16 %v959, %v951
        %v1144 = vpack.c.b16 %v960, %v952
        %v1145 = vpack.c.b16 %v961, %v953
        %v1146 = vpack.c.b16 %v962, %v954
        %v1147 = vpack.c.b16 %v963, %v955
        %v1148 = vpack.c.b16 %v964, %v956
        %v1149 = vpack.c.b16 %v973, %v965
        %v1150 = vpack.c.b16 %v974, %v966
        %v1151 = vpack.c.b16 %v975, %v967
        %v1152 = vpack.c.b16 %v976, %v968
        %v1153 = vpack.c.b16 %v977, %v969
        %v1154 = vpack.c.b16 %v978, %v970
        %v1155 = vpack.c.b16 %v979, %v971
        %v1156 = vpack.c.b16 %v980, %v972
        %v1157 = vpack.c.b16 %v989, %v981
        %v1158 = vpack.c.b16 %v990, %v982
        %v1159 = vpack.c.b16 %v991, %v983
        %v1160 = vpack.c.b16 %v992, %v984
        %v1161 = vpack.c.b16 %v993, %v985
        %v1162 = vpack.c.b16 %v994, %v986
        %v1163 = vpack.c.b16 %v995, %v987
        %v1164 = vpack.c.b16 %v996, %v988
        %v1165 = vpack.c.b16 %v1005, %v997
        %v1166 = vpack.c.b16 %v1006, %v998
        %v1167 = vpack.c.b16 %v1007, %v999
        %v1168 = vpack.c.b16 %v1008, %v1000
        %v1169 = vpack.c.b16 %v1009, %v1001
        %v1170 = vpack.c.b16 %v1010, %v1002
        %v1171 = vpack.c.b16 %v1011, %v1003
        %v1172 = vpack.c.b16 %v1012, %v1004
        %v1173 = vpack.c.b16 %v1021, %v1013
        %v1174 = vpack.c.b16 %v1022, %v1014
        %v1175 = vpack.c.b16 %v1023, %v1015
        %v1176 = vpack.c.b16 %v1024, %v1016
        %v1177 = vpack.c.b16 %v1025, %v1017
        %v1178 = vpack.c.b16 %v1026, %v1018
        %v1179 = vpack.c.b16 %v1027, %v1019
        %v1180 = vpack.c.b16 %v1028, %v1020
        %v1181 = vpack.c.b16 %v1037, %v1029
        %v1182 = vpack.c.b16 %v1038, %v1030
        %v1183 = vpack.c.b16 %v1039, %v1031
        %v1184 = vpack.c.b16 %v1040, %v1032
        %v1185 = vpack.c.b16 %v1041, %v1033
        %v1186 = vpack.c.b16 %v1042, %v1034
        %v1187 = vpack.c.b16 %v1043, %v1035
        %v1188 = vpack.c.b16 %v1044, %v1036
        %v1189 = vpack.c.b16 %v1053, %v1045
        %v1190 = vpack.c.b16 %v1054, %v1046
        %v1191 = vpack.c.b16 %v1055, %v1047
        %v1192 = vpack.c.b16 %v1056, %v1048
        %v1193 = vpack.c.b16 %v1057, %v1049
        %v1194 = vpack.c.b16 %v1058, %v1050
        %v1195 = vpack.c.b16 %v1059, %v1051
        %v1196 = vpack.c.b16 %v1060, %v1052
        %v1197 = vpack.c.b16 %v1069, %v1061
        %v1198 = vpack.c.b16 %v1070, %v1062
        %v1199 = vpack.c.b16 %v1071, %v1063
        %v1200 = vpack.c.b16 %v1072, %v1064
        %v1201 = vpack.c.b16 %v1073, %v1065
        %v1202 = vpack.c.b16 %v1074, %v1066
        %v1203 = vpack.c.b16 %v1075, %v1067
        %v1204 = vpack.c.b16 %v1076, %v1068
        %1333 = vmatpush.bf16.msra.mxu0 %v1133
        %1334 = vmatpush.bf16.msra.mxu0 %v1125
        %1335 = vmatpush.bf16.msra.mxu0 %v1117
        %1336 = vmatpush.bf16.msra.mxu0 %v1109
        %1337 = vmatpush.bf16.msra.mxu0 %v1101
        %1338 = vmatpush.bf16.msra.mxu0 %v1093
        %1339 = vmatpush.bf16.msra.mxu0 %v1085
        %1340 = vmatpush.bf16.msra.mxu0 %v1077
        %1341 = vmatmul.bf16.gmra.mxu0 %v563
        %v1342 = vpop.f32.mrf.mxu0
        %v1343 = vadd.f32 0.0, %v1342
        %v1344 = vpop.f32.mrf.mxu0
        %1345 = vdwg.mxu0
        %1346 = vmatpush.bf16.msra.mxu0 %v1197
        %1347 = vmatpush.bf16.msra.mxu0 %v1189
        %1348 = vmatpush.bf16.msra.mxu0 %v1181
        %1349 = vmatpush.bf16.msra.mxu0 %v1173
        %1350 = vmatpush.bf16.msra.mxu0 %v1165
        %1351 = vmatpush.bf16.msra.mxu0 %v1157
        %1352 = vmatpush.bf16.msra.mxu0 %v1149
        %1353 = vmatpush.bf16.msra.mxu0 %v1141
        %1354 = vmatmul.bf16.gmra.mxu0 %v564
        %v1355 = vpop.f32.mrf.mxu0
        %v1356 = vadd.f32 %v1343, %v1355
        %v1357 = vpop.f32.mrf.mxu0
        %1358 = vdwg.mxu0
        %1359 = vmatpush.bf16.msra.mxu0 %v1134
        %1360 = vmatpush.bf16.msra.mxu0 %v1126
        %1361 = vmatpush.bf16.msra.mxu0 %v1118
        %1362 = vmatpush.bf16.msra.mxu0 %v1110
        %1363 = vmatpush.bf16.msra.mxu0 %v1102
        %1364 = vmatpush.bf16.msra.mxu0 %v1094
        %1365 = vmatpush.bf16.msra.mxu0 %v1086
        %1366 = vmatpush.bf16.msra.mxu0 %v1078
        %1367 = vmatmul.bf16.gmra.mxu0 %v563
        %v1368 = vpop.f32.mrf.mxu0
        %v1369 = vadd.f32 0.0, %v1368
        %v1370 = vpop.f32.mrf.mxu0
        %1371 = vdwg.mxu0
        %1372 = vmatpush.bf16.msra.mxu0 %v1198
        %1373 = vmatpush.bf16.msra.mxu0 %v1190
        %1374 = vmatpush.bf16.msra.mxu0 %v1182
        %1375 = vmatpush.bf16.msra.mxu0 %v1174
        %1376 = vmatpush.bf16.msra.mxu0 %v1166
        %1377 = vmatpush.bf16.msra.mxu0 %v1158
        %1378 = vmatpush.bf16.msra.mxu0 %v1150
        %1379 = vmatpush.bf16.msra.mxu0 %v1142
        %1380 = vmatmul.bf16.gmra.mxu0 %v564
        %v1381 = vpop.f32.mrf.mxu0
        %v1382 = vadd.f32 %v1369, %v1381
        %v1383 = vpop.f32.mrf.mxu0
        %1384 = vdwg.mxu0
        %1385 = vmatpush.bf16.msra.mxu0 %v1135
        %1386 = vmatpush.bf16.msra.mxu0 %v1127
        %1387 = vmatpush.bf16.msra.mxu0 %v1119
        %1388 = vmatpush.bf16.msra.mxu0 %v1111
        %1389 = vmatpush.bf16.msra.mxu0 %v1103
        %1390 = vmatpush.bf16.msra.mxu0 %v1095
        %1391 = vmatpush.bf16.msra.mxu0 %v1087
        %1392 = vmatpush.bf16.msra.mxu0 %v1079
        %1393 = vmatmul.bf16.gmra.mxu0 %v563
        %v1394 = vpop.f32.mrf.mxu0
        %v1395 = vadd.f32 0.0, %v1394
        %v1396 = vpop.f32.mrf.mxu0
        %1397 = vdwg.mxu0
        %1398 = vmatpush.bf16.msra.mxu0 %v1199
        %1399 = vmatpush.bf16.msra.mxu0 %v1191
        %1400 = vmatpush.bf16.msra.mxu0 %v1183
        %1401 = vmatpush.bf16.msra.mxu0 %v1175
        %1402 = vmatpush.bf16.msra.mxu0 %v1167
        %1403 = vmatpush.bf16.msra.mxu0 %v1159
        %1404 = vmatpush.bf16.msra.mxu0 %v1151
        %1405 = vmatpush.bf16.msra.mxu0 %v1143
        %1406 = vmatmul.bf16.gmra.mxu0 %v564
        %v1407 = vpop.f32.mrf.mxu0
        %v1408 = vadd.f32 %v1395, %v1407
        %v1409 = vpop.f32.mrf.mxu0
        %1410 = vdwg.mxu0
        %1411 = vmatpush.bf16.msra.mxu0 %v1136
        %1412 = vmatpush.bf16.msra.mxu0 %v1128
        %1413 = vmatpush.bf16.msra.mxu0 %v1120
        %1414 = vmatpush.bf16.msra.mxu0 %v1112
        %1415 = vmatpush.bf16.msra.mxu0 %v1104
        %1416 = vmatpush.bf16.msra.mxu0 %v1096
        %1417 = vmatpush.bf16.msra.mxu0 %v1088
        %1418 = vmatpush.bf16.msra.mxu0 %v1080
        %1419 = vmatmul.bf16.gmra.mxu0 %v563
        %v1420 = vpop.f32.mrf.mxu0
        %v1421 = vadd.f32 0.0, %v1420
        %v1422 = vpop.f32.mrf.mxu0
        %1423 = vdwg.mxu0
        %1424 = vmatpush.bf16.msra.mxu0 %v1200
        %1425 = vmatpush.bf16.msra.mxu0 %v1192
        %1426 = vmatpush.bf16.msra.mxu0 %v1184
        %1427 = vmatpush.bf16.msra.mxu0 %v1176
        %1428 = vmatpush.bf16.msra.mxu0 %v1168
        %1429 = vmatpush.bf16.msra.mxu0 %v1160
        %1430 = vmatpush.bf16.msra.mxu0 %v1152
        %1431 = vmatpush.bf16.msra.mxu0 %v1144
        %1432 = vmatmul.bf16.gmra.mxu0 %v564
        %v1433 = vpop.f32.mrf.mxu0
        %v1434 = vadd.f32 %v1421, %v1433
        %v1435 = vpop.f32.mrf.mxu0
        %1436 = vdwg.mxu0
        %1437 = vmatpush.bf16.msra.mxu0 %v1137
        %1438 = vmatpush.bf16.msra.mxu0 %v1129
        %1439 = vmatpush.bf16.msra.mxu0 %v1121
        %1440 = vmatpush.bf16.msra.mxu0 %v1113
        %1441 = vmatpush.bf16.msra.mxu0 %v1105
        %1442 = vmatpush.bf16.msra.mxu0 %v1097
        %1443 = vmatpush.bf16.msra.mxu0 %v1089
        %1444 = vmatpush.bf16.msra.mxu0 %v1081
        %1445 = vmatmul.bf16.gmra.mxu0 %v563
        %v1446 = vpop.f32.mrf.mxu0
        %v1447 = vadd.f32 0.0, %v1446
        %v1448 = vpop.f32.mrf.mxu0
        %1449 = vdwg.mxu0
        %1450 = vmatpush.bf16.msra.mxu0 %v1201
        %1451 = vmatpush.bf16.msra.mxu0 %v1193
        %1452 = vmatpush.bf16.msra.mxu0 %v1185
        %1453 = vmatpush.bf16.msra.mxu0 %v1177
        %1454 = vmatpush.bf16.msra.mxu0 %v1169
        %1455 = vmatpush.bf16.msra.mxu0 %v1161
        %1456 = vmatpush.bf16.msra.mxu0 %v1153
        %1457 = vmatpush.bf16.msra.mxu0 %v1145
        %1458 = vmatmul.bf16.gmra.mxu0 %v564
        %v1459 = vpop.f32.mrf.mxu0
        %v1460 = vadd.f32 %v1447, %v1459
        %v1461 = vpop.f32.mrf.mxu0
        %1462 = vdwg.mxu0
        %1463 = vmatpush.bf16.msra.mxu0 %v1138
        %1464 = vmatpush.bf16.msra.mxu0 %v1130
        %1465 = vmatpush.bf16.msra.mxu0 %v1122
        %1466 = vmatpush.bf16.msra.mxu0 %v1114
        %1467 = vmatpush.bf16.msra.mxu0 %v1106
        %1468 = vmatpush.bf16.msra.mxu0 %v1098
        %1469 = vmatpush.bf16.msra.mxu0 %v1090
        %1470 = vmatpush.bf16.msra.mxu0 %v1082
        %1471 = vmatmul.bf16.gmra.mxu0 %v563
        %v1472 = vpop.f32.mrf.mxu0
        %v1473 = vadd.f32 0.0, %v1472
        %v1474 = vpop.f32.mrf.mxu0
        %1475 = vdwg.mxu0
        %1476 = vmatpush.bf16.msra.mxu0 %v1202
        %1477 = vmatpush.bf16.msra.mxu0 %v1194
        %1478 = vmatpush.bf16.msra.mxu0 %v1186
        %1479 = vmatpush.bf16.msra.mxu0 %v1178
        %1480 = vmatpush.bf16.msra.mxu0 %v1170
        %1481 = vmatpush.bf16.msra.mxu0 %v1162
        %1482 = vmatpush.bf16.msra.mxu0 %v1154
        %1483 = vmatpush.bf16.msra.mxu0 %v1146
        %1484 = vmatmul.bf16.gmra.mxu0 %v564
        %v1485 = vpop.f32.mrf.mxu0
        %v1486 = vadd.f32 %v1473, %v1485
        %v1487 = vpop.f32.mrf.mxu0
        %1488 = vdwg.mxu0
        %1489 = vmatpush.bf16.msra.mxu0 %v1139
        %1490 = vmatpush.bf16.msra.mxu0 %v1131
        %1491 = vmatpush.bf16.msra.mxu0 %v1123
        %1492 = vmatpush.bf16.msra.mxu0 %v1115
        %1493 = vmatpush.bf16.msra.mxu0 %v1107
        %1494 = vmatpush.bf16.msra.mxu0 %v1099
        %1495 = vmatpush.bf16.msra.mxu0 %v1091
        %1496 = vmatpush.bf16.msra.mxu0 %v1083
        %1497 = vmatmul.bf16.gmra.mxu0 %v563
        %v1498 = vpop.f32.mrf.mxu0
        %v1499 = vadd.f32 0.0, %v1498
        %v1500 = vpop.f32.mrf.mxu0
        %1501 = vdwg.mxu0
        %1502 = vmatpush.bf16.msra.mxu0 %v1203
        %1503 = vmatpush.bf16.msra.mxu0 %v1195
        %1504 = vmatpush.bf16.msra.mxu0 %v1187
        %1505 = vmatpush.bf16.msra.mxu0 %v1179
        %1506 = vmatpush.bf16.msra.mxu0 %v1171
        %1507 = vmatpush.bf16.msra.mxu0 %v1163
        %1508 = vmatpush.bf16.msra.mxu0 %v1155
        %1509 = vmatpush.bf16.msra.mxu0 %v1147
        %1510 = vmatmul.bf16.gmra.mxu0 %v564
        %v1511 = vpop.f32.mrf.mxu0
        %v1512 = vadd.f32 %v1499, %v1511
        %v1513 = vpop.f32.mrf.mxu0
        %1514 = vdwg.mxu0
        %1515 = vmatpush.bf16.msra.mxu0 %v1140
        %1516 = vmatpush.bf16.msra.mxu0 %v1132
        %1517 = vmatpush.bf16.msra.mxu0 %v1124
        %1518 = vmatpush.bf16.msra.mxu0 %v1116
        %1519 = vmatpush.bf16.msra.mxu0 %v1108
        %1520 = vmatpush.bf16.msra.mxu0 %v1100
        %1521 = vmatpush.bf16.msra.mxu0 %v1092
        %1522 = vmatpush.bf16.msra.mxu0 %v1084
        %1523 = vmatmul.bf16.gmra.mxu0 %v563
        %v1524 = vpop.f32.mrf.mxu0
        %v1525 = vadd.f32 0.0, %v1524
        %v1526 = vpop.f32.mrf.mxu0
        %1527 = vdwg.mxu0
        %1528 = vmatpush.bf16.msra.mxu0 %v1204
        %1529 = vmatpush.bf16.msra.mxu0 %v1196
        %1530 = vmatpush.bf16.msra.mxu0 %v1188
        %1531 = vmatpush.bf16.msra.mxu0 %v1180
        %1532 = vmatpush.bf16.msra.mxu0 %v1172
        %1533 = vmatpush.bf16.msra.mxu0 %v1164
        %1534 = vmatpush.bf16.msra.mxu0 %v1156
        %1535 = vmatpush.bf16.msra.mxu0 %v1148
        %1536 = vmatmul.bf16.gmra.mxu0 %v564
        %v1537 = vpop.f32.mrf.mxu0
        %v1538 = vadd.f32 %v1525, %v1537
        %v1539 = vpop.f32.mrf.mxu0
        %1540 = vdwg.mxu0
        %v1541 = vadd.f32 %v555, %v1356
        %v1542 = vadd.f32 %v556, %v1382
        %v1543 = vadd.f32 %v557, %v1408
        %v1544 = vadd.f32 %v558, %v1434
        %v1545 = vadd.f32 %v559, %v1460
        %v1546 = vadd.f32 %v560, %v1486
        %v1547 = vadd.f32 %v561, %v1512
        %v1548 = vadd.f32 %v562, %v1538
        %1549 = vst [vmem:[#allocation2] sm:$0xff] %v1541
        %1550 = vst [vmem:[#allocation2 + $0x8] sm:$0xff] %v1542
        %1551 = vst [vmem:[#allocation2 + $0x10] sm:$0xff] %v1543
        %1552 = vst [vmem:[#allocation2 + $0x18] sm:$0xff] %v1544
        %1553 = vst [vmem:[#allocation2 + $0x20] sm:$0xff] %v1545
        %1554 = vst [vmem:[#allocation2 + $0x28] sm:$0xff] %v1546
        %1555 = vst [vmem:[#allocation2 + $0x30] sm:$0xff] %v1547
        %1556 = vst [vmem:[#allocation2 + $0x38] sm:$0xff] %v1548
        %p1557 = scmp.eq.s32.totalorder %s32, 3
        // Predicated region
        $region81: #{tpu_custom_call.1} parent=47 // pred_check
          %p1558 = pneg %p1557
        $region82: #{tpu_custom_call.1} parent=47 // pred_check_branch
          %1560 = sbr.rel (%p1558) target = $region84
        $region83: #{tpu_custom_call.1} parent=47 // pred_region
          %v1561 = vld [vmem:[#allocation2] sm:$0xff]
          %v1562 = vld [vmem:[#allocation2 + $0x8] sm:$0xff]
          %v1563 = vld [vmem:[#allocation2 + $0x10] sm:$0xff]
          %v1564 = vld [vmem:[#allocation2 + $0x18] sm:$0xff]
          %v1565 = vld [vmem:[#allocation2 + $0x20] sm:$0xff]
          %v1566 = vld [vmem:[#allocation2 + $0x28] sm:$0xff]
          %v1567 = vld [vmem:[#allocation2 + $0x30] sm:$0xff]
          %v1568 = vld [vmem:[#allocation2 + $0x38] sm:$0xff]
          %v1569 = vmax.f32 %v1561, 0.0
          %v1570 = vmax.f32 %v1562, 0.0
          %v1571 = vmax.f32 %v1563, 0.0
          %v1572 = vmax.f32 %v1564, 0.0
          %v1573 = vmax.f32 %v1565, 0.0
          %v1574 = vmax.f32 %v1566, 0.0
          %v1575 = vmax.f32 %v1567, 0.0
          %v1576 = vmax.f32 %v1568, 0.0
          %v1577 = vpack.c.bf16 %v1569, %v1569
          %v1578 = vpack.c.bf16 %v1570, %v1570
          %v1579 = vpack.c.bf16 %v1571, %v1571
          %v1580 = vpack.c.bf16 %v1572, %v1572
          %v1581 = vpack.c.bf16 %v1573, %v1573
          %v1582 = vpack.c.bf16 %v1574, %v1574
          %v1583 = vpack.c.bf16 %v1575, %v1575
          %v1584 = vpack.c.bf16 %v1576, %v1576
          %v1585 = vld [vmem:[#allocation12] sm:$0xf]
          %v1586 = vld [vmem:[#allocation12 + $0x4] sm:$0xf]
          %v1587 = vld [vmem:[#allocation12 + $0x8] sm:$0xf]
          %v1588 = vld [vmem:[#allocation12 + $0xc] sm:$0xf]
          %v1589 = vld [vmem:[#allocation12 + $0x10] sm:$0xf]
          %v1590 = vld [vmem:[#allocation12 + $0x14] sm:$0xf]
          %v1591 = vld [vmem:[#allocation12 + $0x18] sm:$0xf]
          %v1592 = vld [vmem:[#allocation12 + $0x1c] sm:$0xf]
          %v1593 = vld [vmem:[#allocation12 + $0x20] sm:$0xf]
          %v1594 = vld [vmem:[#allocation12 + $0x24] sm:$0xf]
          %v1595 = vld [vmem:[#allocation12 + $0x28] sm:$0xf]
          %v1596 = vld [vmem:[#allocation12 + $0x2c] sm:$0xf]
          %v1597 = vld [vmem:[#allocation12 + $0x30] sm:$0xf]
          %v1598 = vld [vmem:[#allocation12 + $0x34] sm:$0xf]
          %v1599 = vld [vmem:[#allocation12 + $0x38] sm:$0xf]
          %v1600 = vld [vmem:[#allocation12 + $0x3c] sm:$0xf]
          %v1601 = vld [vmem:[#allocation12 + $0x40] sm:$0xf]
          %v1602 = vld [vmem:[#allocation12 + $0x44] sm:$0xf]
          %v1603 = vld [vmem:[#allocation12 + $0x48] sm:$0xf]
          %v1604 = vld [vmem:[#allocation12 + $0x4c] sm:$0xf]
          %v1605 = vld [vmem:[#allocation12 + $0x50] sm:$0xf]
          %v1606 = vld [vmem:[#allocation12 + $0x54] sm:$0xf]
          %v1607 = vld [vmem:[#allocation12 + $0x58] sm:$0xf]
          %v1608 = vld [vmem:[#allocation12 + $0x5c] sm:$0xf]
          %v1609 = vld [vmem:[#allocation12 + $0x60] sm:$0xf]
          %v1610 = vld [vmem:[#allocation12 + $0x64] sm:$0xf]
          %v1611 = vld [vmem:[#allocation12 + $0x68] sm:$0xf]
          %v1612 = vld [vmem:[#allocation12 + $0x6c] sm:$0xf]
          %v1613 = vld [vmem:[#allocation12 + $0x70] sm:$0xf]
          %v1614 = vld [vmem:[#allocation12 + $0x74] sm:$0xf]
          %v1615 = vld [vmem:[#allocation12 + $0x78] sm:$0xf]
          %v1616 = vld [vmem:[#allocation12 + $0x7c] sm:$0xf]
          %v1617 = vld [vmem:[#allocation12 + $0x80] sm:$0xf]
          %v1618 = vld [vmem:[#allocation12 + $0x84] sm:$0xf]
          %v1619 = vld [vmem:[#allocation12 + $0x88] sm:$0xf]
          %v1620 = vld [vmem:[#allocation12 + $0x8c] sm:$0xf]
          %v1621 = vld [vmem:[#allocation12 + $0x90] sm:$0xf]
          %v1622 = vld [vmem:[#allocation12 + $0x94] sm:$0xf]
          %v1623 = vld [vmem:[#allocation12 + $0x98] sm:$0xf]
          %v1624 = vld [vmem:[#allocation12 + $0x9c] sm:$0xf]
          %v1625 = vld [vmem:[#allocation12 + $0xa0] sm:$0xf]
          %v1626 = vld [vmem:[#allocation12 + $0xa4] sm:$0xf]
          %v1627 = vld [vmem:[#allocation12 + $0xa8] sm:$0xf]
          %v1628 = vld [vmem:[#allocation12 + $0xac] sm:$0xf]
          %v1629 = vld [vmem:[#allocation12 + $0xb0] sm:$0xf]
          %v1630 = vld [vmem:[#allocation12 + $0xb4] sm:$0xf]
          %v1631 = vld [vmem:[#allocation12 + $0xb8] sm:$0xf]
          %v1632 = vld [vmem:[#allocation12 + $0xbc] sm:$0xf]
          %v1633 = vld [vmem:[#allocation12 + $0xc0] sm:$0xf]
          %v1634 = vld [vmem:[#allocation12 + $0xc4] sm:$0xf]
          %v1635 = vld [vmem:[#allocation12 + $0xc8] sm:$0xf]
          %v1636 = vld [vmem:[#allocation12 + $0xcc] sm:$0xf]
          %v1637 = vld [vmem:[#allocation12 + $0xd0] sm:$0xf]
          %v1638 = vld [vmem:[#allocation12 + $0xd4] sm:$0xf]
          %v1639 = vld [vmem:[#allocation12 + $0xd8] sm:$0xf]
          %v1640 = vld [vmem:[#allocation12 + $0xdc] sm:$0xf]
          %v1641 = vld [vmem:[#allocation12 + $0xe0] sm:$0xf]
          %v1642 = vld [vmem:[#allocation12 + $0xe4] sm:$0xf]
          %v1643 = vld [vmem:[#allocation12 + $0xe8] sm:$0xf]
          %v1644 = vld [vmem:[#allocation12 + $0xec] sm:$0xf]
          %v1645 = vld [vmem:[#allocation12 + $0xf0] sm:$0xf]
          %v1646 = vld [vmem:[#allocation12 + $0xf4] sm:$0xf]
          %v1647 = vld [vmem:[#allocation12 + $0xf8] sm:$0xf]
          %v1648 = vld [vmem:[#allocation12 + $0xfc] sm:$0xf]
          %v1649 = vld [vmem:[#allocation12 + $0x100] sm:$0xf]
          %v1650 = vld [vmem:[#allocation12 + $0x104] sm:$0xf]
          %v1651 = vld [vmem:[#allocation12 + $0x108] sm:$0xf]
          %v1652 = vld [vmem:[#allocation12 + $0x10c] sm:$0xf]
          %v1653 = vld [vmem:[#allocation12 + $0x110] sm:$0xf]
          %v1654 = vld [vmem:[#allocation12 + $0x114] sm:$0xf]
          %v1655 = vld [vmem:[#allocation12 + $0x118] sm:$0xf]
          %v1656 = vld [vmem:[#allocation12 + $0x11c] sm:$0xf]
          %v1657 = vld [vmem:[#allocation12 + $0x120] sm:$0xf]
          %v1658 = vld [vmem:[#allocation12 + $0x124] sm:$0xf]
          %v1659 = vld [vmem:[#allocation12 + $0x128] sm:$0xf]
          %v1660 = vld [vmem:[#allocation12 + $0x12c] sm:$0xf]
          %v1661 = vld [vmem:[#allocation12 + $0x130] sm:$0xf]
          %v1662 = vld [vmem:[#allocation12 + $0x134] sm:$0xf]
          %v1663 = vld [vmem:[#allocation12 + $0x138] sm:$0xf]
          %v1664 = vld [vmem:[#allocation12 + $0x13c] sm:$0xf]
          %v1665 = vld [vmem:[#allocation12 + $0x140] sm:$0xf]
          %v1666 = vld [vmem:[#allocation12 + $0x144] sm:$0xf]
          %v1667 = vld [vmem:[#allocation12 + $0x148] sm:$0xf]
          %v1668 = vld [vmem:[#allocation12 + $0x14c] sm:$0xf]
          %v1669 = vld [vmem:[#allocation12 + $0x150] sm:$0xf]
          %v1670 = vld [vmem:[#allocation12 + $0x154] sm:$0xf]
          %v1671 = vld [vmem:[#allocation12 + $0x158] sm:$0xf]
          %v1672 = vld [vmem:[#allocation12 + $0x15c] sm:$0xf]
          %v1673 = vld [vmem:[#allocation12 + $0x160] sm:$0xf]
          %v1674 = vld [vmem:[#allocation12 + $0x164] sm:$0xf]
          %v1675 = vld [vmem:[#allocation12 + $0x168] sm:$0xf]
          %v1676 = vld [vmem:[#allocation12 + $0x16c] sm:$0xf]
          %v1677 = vld [vmem:[#allocation12 + $0x170] sm:$0xf]
          %v1678 = vld [vmem:[#allocation12 + $0x174] sm:$0xf]
          %v1679 = vld [vmem:[#allocation12 + $0x178] sm:$0xf]
          %v1680 = vld [vmem:[#allocation12 + $0x17c] sm:$0xf]
          %v1681 = vld [vmem:[#allocation12 + $0x180] sm:$0xf]
          %v1682 = vld [vmem:[#allocation12 + $0x184] sm:$0xf]
          %v1683 = vld [vmem:[#allocation12 + $0x188] sm:$0xf]
          %v1684 = vld [vmem:[#allocation12 + $0x18c] sm:$0xf]
          %v1685 = vld [vmem:[#allocation12 + $0x190] sm:$0xf]
          %v1686 = vld [vmem:[#allocation12 + $0x194] sm:$0xf]
          %v1687 = vld [vmem:[#allocation12 + $0x198] sm:$0xf]
          %v1688 = vld [vmem:[#allocation12 + $0x19c] sm:$0xf]
          %v1689 = vld [vmem:[#allocation12 + $0x1a0] sm:$0xf]
          %v1690 = vld [vmem:[#allocation12 + $0x1a4] sm:$0xf]
          %v1691 = vld [vmem:[#allocation12 + $0x1a8] sm:$0xf]
          %v1692 = vld [vmem:[#allocation12 + $0x1ac] sm:$0xf]
          %v1693 = vld [vmem:[#allocation12 + $0x1b0] sm:$0xf]
          %v1694 = vld [vmem:[#allocation12 + $0x1b4] sm:$0xf]
          %v1695 = vld [vmem:[#allocation12 + $0x1b8] sm:$0xf]
          %v1696 = vld [vmem:[#allocation12 + $0x1bc] sm:$0xf]
          %v1697 = vld [vmem:[#allocation12 + $0x1c0] sm:$0xf]
          %v1698 = vld [vmem:[#allocation12 + $0x1c4] sm:$0xf]
          %v1699 = vld [vmem:[#allocation12 + $0x1c8] sm:$0xf]
          %v1700 = vld [vmem:[#allocation12 + $0x1cc] sm:$0xf]
          %v1701 = vld [vmem:[#allocation12 + $0x1d0] sm:$0xf]
          %v1702 = vld [vmem:[#allocation12 + $0x1d4] sm:$0xf]
          %v1703 = vld [vmem:[#allocation12 + $0x1d8] sm:$0xf]
          %v1704 = vld [vmem:[#allocation12 + $0x1dc] sm:$0xf]
          %v1705 = vld [vmem:[#allocation12 + $0x1e0] sm:$0xf]
          %v1706 = vld [vmem:[#allocation12 + $0x1e4] sm:$0xf]
          %v1707 = vld [vmem:[#allocation12 + $0x1e8] sm:$0xf]
          %v1708 = vld [vmem:[#allocation12 + $0x1ec] sm:$0xf]
          %v1709 = vld [vmem:[#allocation12 + $0x1f0] sm:$0xf]
          %v1710 = vld [vmem:[#allocation12 + $0x1f4] sm:$0xf]
          %v1711 = vld [vmem:[#allocation12 + $0x1f8] sm:$0xf]
          %v1712 = vld [vmem:[#allocation12 + $0x1fc] sm:$0xf]
          %v1713 = vld [vmem:[#allocation14] sm:$0x1]
          %v1715 = vperm.slane %v1713, 0
          %v1845 = vunpack.c.l.b16 %v1585
          %v1846 = vunpack.c.l.b16 %v1586
          %v1847 = vunpack.c.l.b16 %v1587
          %v1848 = vunpack.c.l.b16 %v1588
          %v1849 = vunpack.c.l.b16 %v1589
          %v1850 = vunpack.c.l.b16 %v1590
          %v1851 = vunpack.c.l.b16 %v1591
          %v1852 = vunpack.c.l.b16 %v1592
          %v1853 = vunpack.c.l.b16 %v1593
          %v1854 = vunpack.c.l.b16 %v1594
          %v1855 = vunpack.c.l.b16 %v1595
          %v1856 = vunpack.c.l.b16 %v1596
          %v1857 = vunpack.c.l.b16 %v1597
          %v1858 = vunpack.c.l.b16 %v1598
          %v1859 = vunpack.c.l.b16 %v1599
          %v1860 = vunpack.c.l.b16 %v1600
          %v1861 = vunpack.c.l.b16 %v1601
          %v1862 = vunpack.c.l.b16 %v1602
          %v1863 = vunpack.c.l.b16 %v1603
          %v1864 = vunpack.c.l.b16 %v1604
          %v1865 = vunpack.c.l.b16 %v1605
          %v1866 = vunpack.c.l.b16 %v1606
          %v1867 = vunpack.c.l.b16 %v1607
          %v1868 = vunpack.c.l.b16 %v1608
          %v1869 = vunpack.c.l.b16 %v1609
          %v1870 = vunpack.c.l.b16 %v1610
          %v1871 = vunpack.c.l.b16 %v1611
          %v1872 = vunpack.c.l.b16 %v1612
          %v1873 = vunpack.c.l.b16 %v1613
          %v1874 = vunpack.c.l.b16 %v1614
          %v1875 = vunpack.c.l.b16 %v1615
          %v1876 = vunpack.c.l.b16 %v1616
          %v1877 = vunpack.c.l.b16 %v1617
          %v1878 = vunpack.c.l.b16 %v1618
          %v1879 = vunpack.c.l.b16 %v1619
          %v1880 = vunpack.c.l.b16 %v1620
          %v1881 = vunpack.c.l.b16 %v1621
          %v1882 = vunpack.c.l.b16 %v1622
          %v1883 = vunpack.c.l.b16 %v1623
          %v1884 = vunpack.c.l.b16 %v1624
          %v1885 = vunpack.c.l.b16 %v1625
          %v1886 = vunpack.c.l.b16 %v1626
          %v1887 = vunpack.c.l.b16 %v1627
          %v1888 = vunpack.c.l.b16 %v1628
          %v1889 = vunpack.c.l.b16 %v1629
          %v1890 = vunpack.c.l.b16 %v1630
          %v1891 = vunpack.c.l.b16 %v1631
          %v1892 = vunpack.c.l.b16 %v1632
          %v1893 = vunpack.c.l.b16 %v1633
          %v1894 = vunpack.c.l.b16 %v1634
          %v1895 = vunpack.c.l.b16 %v1635
          %v1896 = vunpack.c.l.b16 %v1636
          %v1897 = vunpack.c.l.b16 %v1637
          %v1898 = vunpack.c.l.b16 %v1638
          %v1899 = vunpack.c.l.b16 %v1639
          %v1900 = vunpack.c.l.b16 %v1640
          %v1901 = vunpack.c.l.b16 %v1641
          %v1902 = vunpack.c.l.b16 %v1642
          %v1903 = vunpack.c.l.b16 %v1643
          %v1904 = vunpack.c.l.b16 %v1644
          %v1905 = vunpack.c.l.b16 %v1645
          %v1906 = vunpack.c.l.b16 %v1646
          %v1907 = vunpack.c.l.b16 %v1647
          %v1908 = vunpack.c.l.b16 %v1648
          %v1909 = vunpack.c.l.b16 %v1649
          %v1910 = vunpack.c.l.b16 %v1650
          %v1911 = vunpack.c.l.b16 %v1651
          %v1912 = vunpack.c.l.b16 %v1652
          %v1913 = vunpack.c.l.b16 %v1653
          %v1914 = vunpack.c.l.b16 %v1654
          %v1915 = vunpack.c.l.b16 %v1655
          %v1916 = vunpack.c.l.b16 %v1656
          %v1917 = vunpack.c.l.b16 %v1657
          %v1918 = vunpack.c.l.b16 %v1658
          %v1919 = vunpack.c.l.b16 %v1659
          %v1920 = vunpack.c.l.b16 %v1660
          %v1921 = vunpack.c.l.b16 %v1661
          %v1922 = vunpack.c.l.b16 %v1662
          %v1923 = vunpack.c.l.b16 %v1663
          %v1924 = vunpack.c.l.b16 %v1664
          %v1925 = vunpack.c.l.b16 %v1665
          %v1926 = vunpack.c.l.b16 %v1666
          %v1927 = vunpack.c.l.b16 %v1667
          %v1928 = vunpack.c.l.b16 %v1668
          %v1929 = vunpack.c.l.b16 %v1669
          %v1930 = vunpack.c.l.b16 %v1670
          %v1931 = vunpack.c.l.b16 %v1671
          %v1932 = vunpack.c.l.b16 %v1672
          %v1933 = vunpack.c.l.b16 %v1673
          %v1934 = vunpack.c.l.b16 %v1674
          %v1935 = vunpack.c.l.b16 %v1675
          %v1936 = vunpack.c.l.b16 %v1676
          %v1937 = vunpack.c.l.b16 %v1677
          %v1938 = vunpack.c.l.b16 %v1678
          %v1939 = vunpack.c.l.b16 %v1679
          %v1940 = vunpack.c.l.b16 %v1680
          %v1941 = vunpack.c.l.b16 %v1681
          %v1942 = vunpack.c.l.b16 %v1682
          %v1943 = vunpack.c.l.b16 %v1683
          %v1944 = vunpack.c.l.b16 %v1684
          %v1945 = vunpack.c.l.b16 %v1685
          %v1946 = vunpack.c.l.b16 %v1686
          %v1947 = vunpack.c.l.b16 %v1687
          %v1948 = vunpack.c.l.b16 %v1688
          %v1949 = vunpack.c.l.b16 %v1689
          %v1950 = vunpack.c.l.b16 %v1690
          %v1951 = vunpack.c.l.b16 %v1691
          %v1952 = vunpack.c.l.b16 %v1692
          %v1953 = vunpack.c.l.b16 %v1693
          %v1954 = vunpack.c.l.b16 %v1694
          %v1955 = vunpack.c.l.b16 %v1695
          %v1956 = vunpack.c.l.b16 %v1696
          %v1957 = vunpack.c.l.b16 %v1697
          %v1958 = vunpack.c.l.b16 %v1698
          %v1959 = vunpack.c.l.b16 %v1699
          %v1960 = vunpack.c.l.b16 %v1700
          %v1961 = vunpack.c.l.b16 %v1701
          %v1962 = vunpack.c.l.b16 %v1702
          %v1963 = vunpack.c.l.b16 %v1703
          %v1964 = vunpack.c.l.b16 %v1704
          %v1965 = vunpack.c.l.b16 %v1705
          %v1966 = vunpack.c.l.b16 %v1706
          %v1967 = vunpack.c.l.b16 %v1707
          %v1968 = vunpack.c.l.b16 %v1708
          %v1969 = vunpack.c.l.b16 %v1709
          %v1970 = vunpack.c.l.b16 %v1710
          %v1971 = vunpack.c.l.b16 %v1711
          %v1972 = vunpack.c.l.b16 %v1712
          %v1973 = vpack.c.b16 %v1846, %v1845
          %v1974 = vpack.c.b16 %v1848, %v1847
          %v1975 = vpack.c.b16 %v1850, %v1849
          %v1976 = vpack.c.b16 %v1852, %v1851
          %v1977 = vpack.c.b16 %v1854, %v1853
          %v1978 = vpack.c.b16 %v1856, %v1855
          %v1979 = vpack.c.b16 %v1858, %v1857
          %v1980 = vpack.c.b16 %v1860, %v1859
          %v1981 = vpack.c.b16 %v1862, %v1861
          %v1982 = vpack.c.b16 %v1864, %v1863
          %v1983 = vpack.c.b16 %v1866, %v1865
          %v1984 = vpack.c.b16 %v1868, %v1867
          %v1985 = vpack.c.b16 %v1870, %v1869
          %v1986 = vpack.c.b16 %v1872, %v1871
          %v1987 = vpack.c.b16 %v1874, %v1873
          %v1988 = vpack.c.b16 %v1876, %v1875
          %v1989 = vpack.c.b16 %v1878, %v1877
          %v1990 = vpack.c.b16 %v1880, %v1879
          %v1991 = vpack.c.b16 %v1882, %v1881
          %v1992 = vpack.c.b16 %v1884, %v1883
          %v1993 = vpack.c.b16 %v1886, %v1885
          %v1994 = vpack.c.b16 %v1888, %v1887
          %v1995 = vpack.c.b16 %v1890, %v1889
          %v1996 = vpack.c.b16 %v1892, %v1891
          %v1997 = vpack.c.b16 %v1894, %v1893
          %v1998 = vpack.c.b16 %v1896, %v1895
          %v1999 = vpack.c.b16 %v1898, %v1897
          %v2000 = vpack.c.b16 %v1900, %v1899
          %v2001 = vpack.c.b16 %v1902, %v1901
          %v2002 = vpack.c.b16 %v1904, %v1903
          %v2003 = vpack.c.b16 %v1906, %v1905
          %v2004 = vpack.c.b16 %v1908, %v1907
          %v2005 = vpack.c.b16 %v1910, %v1909
          %v2006 = vpack.c.b16 %v1912, %v1911
          %v2007 = vpack.c.b16 %v1914, %v1913
          %v2008 = vpack.c.b16 %v1916, %v1915
          %v2009 = vpack.c.b16 %v1918, %v1917
          %v2010 = vpack.c.b16 %v1920, %v1919
          %v2011 = vpack.c.b16 %v1922, %v1921
          %v2012 = vpack.c.b16 %v1924, %v1923
          %v2013 = vpack.c.b16 %v1926, %v1925
          %v2014 = vpack.c.b16 %v1928, %v1927
          %v2015 = vpack.c.b16 %v1930, %v1929
          %v2016 = vpack.c.b16 %v1932, %v1931
          %v2017 = vpack.c.b16 %v1934, %v1933
          %v2018 = vpack.c.b16 %v1936, %v1935
          %v2019 = vpack.c.b16 %v1938, %v1937
          %v2020 = vpack.c.b16 %v1940, %v1939
          %v2021 = vpack.c.b16 %v1942, %v1941
          %v2022 = vpack.c.b16 %v1944, %v1943
          %v2023 = vpack.c.b16 %v1946, %v1945
          %v2024 = vpack.c.b16 %v1948, %v1947
          %v2025 = vpack.c.b16 %v1950, %v1949
          %v2026 = vpack.c.b16 %v1952, %v1951
          %v2027 = vpack.c.b16 %v1954, %v1953
          %v2028 = vpack.c.b16 %v1956, %v1955
          %v2029 = vpack.c.b16 %v1958, %v1957
          %v2030 = vpack.c.b16 %v1960, %v1959
          %v2031 = vpack.c.b16 %v1962, %v1961
          %v2032 = vpack.c.b16 %v1964, %v1963
          %v2033 = vpack.c.b16 %v1966, %v1965
          %v2034 = vpack.c.b16 %v1968, %v1967
          %v2035 = vpack.c.b16 %v1970, %v1969
          %v2036 = vpack.c.b16 %v1972, %v1971
          %2101 = vmatpush.bf16.msra.mxu0 %v1980
          %2102 = vmatpush.bf16.msra.mxu0 %v1979
          %2103 = vmatpush.bf16.msra.mxu0 %v1978
          %2104 = vmatpush.bf16.msra.mxu0 %v1977
          %2105 = vmatpush.bf16.msra.mxu0 %v1976
          %2106 = vmatpush.bf16.msra.mxu0 %v1975
          %2107 = vmatpush.bf16.msra.mxu0 %v1974
          %2108 = vmatpush.bf16.msra.mxu0 %v1973
          %2109 = vmatmul.bf16.gmra.mxu0 %v1577
          %v2110 = vpop.f32.mrf.mxu0
          %v2111 = vadd.f32 %v1715, %v2110
          %v2112 = vpop.f32.mrf.mxu0
          %2113 = vdwg.mxu0
          %2114 = vmatpush.bf16.msra.mxu0 %v1988
          %2115 = vmatpush.bf16.msra.mxu0 %v1987
          %2116 = vmatpush.bf16.msra.mxu0 %v1986
          %2117 = vmatpush.bf16.msra.mxu0 %v1985
          %2118 = vmatpush.bf16.msra.mxu0 %v1984
          %2119 = vmatpush.bf16.msra.mxu0 %v1983
          %2120 = vmatpush.bf16.msra.mxu0 %v1982
          %2121 = vmatpush.bf16.msra.mxu0 %v1981
          %2122 = vmatmul.bf16.gmra.mxu0 %v1578
          %v2123 = vpop.f32.mrf.mxu0
          %v2124 = vadd.f32 %v2111, %v2123
          %v2125 = vpop.f32.mrf.mxu0
          %2126 = vdwg.mxu0
          %2127 = vmatpush.bf16.msra.mxu0 %v1996
          %2128 = vmatpush.bf16.msra.mxu0 %v1995
          %2129 = vmatpush.bf16.msra.mxu0 %v1994
          %2130 = vmatpush.bf16.msra.mxu0 %v1993
          %2131 = vmatpush.bf16.msra.mxu0 %v1992
          %2132 = vmatpush.bf16.msra.mxu0 %v1991
          %2133 = vmatpush.bf16.msra.mxu0 %v1990
          %2134 = vmatpush.bf16.msra.mxu0 %v1989
          %2135 = vmatmul.bf16.gmra.mxu0 %v1579
          %v2136 = vpop.f32.mrf.mxu0
          %v2137 = vadd.f32 %v2124, %v2136
          %v2138 = vpop.f32.mrf.mxu0
          %2139 = vdwg.mxu0
          %2140 = vmatpush.bf16.msra.mxu0 %v2004
          %2141 = vmatpush.bf16.msra.mxu0 %v2003
          %2142 = vmatpush.bf16.msra.mxu0 %v2002
          %2143 = vmatpush.bf16.msra.mxu0 %v2001
          %2144 = vmatpush.bf16.msra.mxu0 %v2000
          %2145 = vmatpush.bf16.msra.mxu0 %v1999
          %2146 = vmatpush.bf16.msra.mxu0 %v1998
          %2147 = vmatpush.bf16.msra.mxu0 %v1997
          %2148 = vmatmul.bf16.gmra.mxu0 %v1580
          %v2149 = vpop.f32.mrf.mxu0
          %v2150 = vadd.f32 %v2137, %v2149
          %v2151 = vpop.f32.mrf.mxu0
          %2152 = vdwg.mxu0
          %2153 = vmatpush.bf16.msra.mxu0 %v2012
          %2154 = vmatpush.bf16.msra.mxu0 %v2011
          %2155 = vmatpush.bf16.msra.mxu0 %v2010
          %2156 = vmatpush.bf16.msra.mxu0 %v2009
          %2157 = vmatpush.bf16.msra.mxu0 %v2008
          %2158 = vmatpush.bf16.msra.mxu0 %v2007
          %2159 = vmatpush.bf16.msra.mxu0 %v2006
          %2160 = vmatpush.bf16.msra.mxu0 %v2005
          %2161 = vmatmul.bf16.gmra.mxu0 %v1581
          %v2162 = vpop.f32.mrf.mxu0
          %v2163 = vadd.f32 %v2150, %v2162
          %v2164 = vpop.f32.mrf.mxu0
          %2165 = vdwg.mxu0
          %2166 = vmatpush.bf16.msra.mxu0 %v2020
          %2167 = vmatpush.bf16.msra.mxu0 %v2019
          %2168 = vmatpush.bf16.msra.mxu0 %v2018
          %2169 = vmatpush.bf16.msra.mxu0 %v2017
          %2170 = vmatpush.bf16.msra.mxu0 %v2016
          %2171 = vmatpush.bf16.msra.mxu0 %v2015
          %2172 = vmatpush.bf16.msra.mxu0 %v2014
          %2173 = vmatpush.bf16.msra.mxu0 %v2013
          %2174 = vmatmul.bf16.gmra.mxu0 %v1582
          %v2175 = vpop.f32.mrf.mxu0
          %v2176 = vadd.f32 %v2163, %v2175
          %v2177 = vpop.f32.mrf.mxu0
          %2178 = vdwg.mxu0
          %2179 = vmatpush.bf16.msra.mxu0 %v2028
          %2180 = vmatpush.bf16.msra.mxu0 %v2027
          %2181 = vmatpush.bf16.msra.mxu0 %v2026
          %2182 = vmatpush.bf16.msra.mxu0 %v2025
          %2183 = vmatpush.bf16.msra.mxu0 %v2024
          %2184 = vmatpush.bf16.msra.mxu0 %v2023
          %2185 = vmatpush.bf16.msra.mxu0 %v2022
          %2186 = vmatpush.bf16.msra.mxu0 %v2021
          %2187 = vmatmul.bf16.gmra.mxu0 %v1583
          %v2188 = vpop.f32.mrf.mxu0
          %v2189 = vadd.f32 %v2176, %v2188
          %v2190 = vpop.f32.mrf.mxu0
          %2191 = vdwg.mxu0
          %2192 = vmatpush.bf16.msra.mxu0 %v2036
          %2193 = vmatpush.bf16.msra.mxu0 %v2035
          %2194 = vmatpush.bf16.msra.mxu0 %v2034
          %2195 = vmatpush.bf16.msra.mxu0 %v2033
          %2196 = vmatpush.bf16.msra.mxu0 %v2032
          %2197 = vmatpush.bf16.msra.mxu0 %v2031
          %2198 = vmatpush.bf16.msra.mxu0 %v2030
          %2199 = vmatpush.bf16.msra.mxu0 %v2029
          %2200 = vmatmul.bf16.gmra.mxu0 %v1584
          %v2201 = vpop.f32.mrf.mxu0
          %v2202 = vadd.f32 %v2189, %v2201
          %v2203 = vpop.f32.mrf.mxu0
          %2204 = vdwg.mxu0
          %v2205 = vlaneseq
          %v2206 = vand.u32 %v2205, 127
          %vm2207 = vcmp.lt.s32.totalorder %v2206, 11
          %v2208 = vsel %vm2207, %v2202, -inf
          %2209 = vmax.xlane.f32.xlu0 %v2208
          %v2210 = vpop.xlane.xlu0 %2209
          %v2211 = vsub.f32 %v2208, %v2210
          %v2212 = vmul.f32 %v2211, 1.442695
          %v2213 = vpow.pop %v2212
          %2214 = vadd.xlane.f32.xlu0 %v2213
          %v2215 = vpop.xlane.xlu0 %2214
          %v2216 = vrcp.pop %v2215
          %v2217 = vmul.f32 %v2213, %v2216
          %2218 = vst [vmem:[#allocation15] sm:$0xff] %v2217
        $region84: #{tpu_custom_call.1} parent=47 // pred_fallthru
          _
        // Predicated region
        $region85: #{tpu_custom_call.1} parent=47 // pred_check
          %p2219 = pneg %p224
        $region86: #{tpu_custom_call.1} parent=47 // pred_check_branch
          %2221 = sbr.rel (%p2219) target = $region88
        $region87: #{tpu_custom_call.1} parent=47 // pred_region
          %2223 = vsyncadd [#allocation5], 0
          %s2224 = smul.addr %s31, 8
          %s2225 = scalar_lea.hbm %s7, %s2224
          %s2227 = sshll.u32 [#allocation15], 4
          %s2228 = int_to_ptr.vmem [resolvable:$true] %s2227
          %s2229 = sshll.u32 %s2225, 4
          %s2230 = int_to_ptr.hbm [resolvable:$true] %s2229
          %2232 = dma.vmem_to_hbm [thread:$0]  %s2228, 128, %s2230, [#allocation5]
        $region88: #{tpu_custom_call.1} parent=47 // pred_fallthru
          _
        // Predicated region
        $region89: #{tpu_custom_call.1} parent=47 // pred_check
          %p2233 = pneg %p224
        $region90: #{tpu_custom_call.1} parent=47 // pred_check_branch
          %2235 = sbr.rel (%p2233) target = $region92
        $region91: #{tpu_custom_call.1} parent=47 // pred_region
          %2237 = dma.done [#allocation5], 128
        $region92: #{tpu_custom_call.1} parent=47 // pred_fallthru
          _
      $region48: #{tpu_custom_call.1} parent=5 // pred_fallthru
        _
      %p2238 = scmp.le.s32.totalorder 2, %s22
      // Predicated region
      $region93: #{tpu_custom_call.1} parent=5 // pred_check
        %p2239 = pneg %p2238
      $region94: #{tpu_custom_call.1} parent=5 // pred_check_branch
        %2241 = sbr.rel (%p2239) target = $region96
      $region95: #{tpu_custom_call.1} parent=5 // pred_region
        %s2242 = ssub.s32 %s22, 2
      $region96: #{tpu_custom_call.1} parent=5 // pred_fallthru
        _
    $region6: #{tpu_custom_call.1} parent=1 // loop_footer
      %s26 = sadd.s32 1, %s22
    $region7: #{tpu_custom_call.1} parent=1 // loop_footer_branch
      %21 = sbr.rel target = $region3
    $region8: #{tpu_custom_call.1} parent=1 // loop_exit
      _
    %2243 = vsyncpa [#allocation4], 1
    %s2244 = scalar_lea.sflag [#allocation4], 1
    %2245 = vsyncpa %s2244, 1
    %2246 = vsyncpa [#allocation7], 1
    %s2247 = scalar_lea.sflag [#allocation7], 1
    %2248 = vsyncpa %s2247, 1
    %2249 = vsyncpa [#allocation10], 1
    %s2250 = scalar_lea.sflag [#allocation10], 1
    %2251 = vsyncpa %s2250, 1
    %2252 = vsyncpa [#allocation13], 1
    %2253 = vsyncpa [#allocation5], 1
    %s2254 = scalar_lea.sflag [#allocation5], 1
    %2255 = vsyncpa %s2254, 1

</llo_original>
